<compile_context>
chip_gen: v7x
topology: tpu7x:2x2x1
jax: 0.10.0
libtpu: 0.0.40
codegen_flags: <defaults>
</compile_context>

<pallas_src>
from functools import partial

import jax
import jax.numpy as jnp
from jax.experimental import pallas as pl
from jax.experimental.pallas import tpu as pltpu


# ----------------------------- fused MLP kernel -----------------------------
def _jais_mlp_kernel(x_ref, wfc12_ref, bfc12_ref, wproj_ref, bproj_ref,
                     o_ref, acc_ref):
    ti = wproj_ref.shape[0]          # static inner-dim tile size
    k = pl.program_id(1)

    @pl.when(k == 0)
    def _():
        acc_ref[...] = jnp.zeros_like(acc_ref)

    x = x_ref[...]                                              # (tm, H) bf16

    # Fused c_fc | c_fc2: one MXU pass over the interleaved [H, 2*ti] RHS slab
    # (single LHS push), f32 accumulation, f32 bias add.
    x12 = jnp.dot(x, wfc12_ref[...],
                  preferred_element_type=jnp.float32) + bfc12_ref[...]
    x1 = x12[:, :ti]
    x2 = x12[:, ti:]

    # SwiGLU in f32: VPU muls + sigmoid on the EUP slot, hidden under MXU work.
    g = x1 * (x2 * jax.nn.sigmoid(x2))

    # c_proj partial product for this inner-dim tile, accumulated in f32 VMEM.
    acc_ref[...] += jnp.dot(g.astype(jnp.bfloat16), wproj_ref[...],
                            preferred_element_type=jnp.float32)

    @pl.when(k == pl.num_programs(1) - 1)
    def _():
        o_ref[...] = (acc_ref[...] + bproj_ref[...]).astype(o_ref.dtype)


# ----------------------------- weight packing --------------------------------
def pack_fc_weights(w_fc, b_fc, w_fc2, b_fc2, *, ti):
    """Interleave c_fc / c_fc2 weights per inner-dim tile into [H, 2I] / [1, 2I].

    Block k of the packed slab is [w_fc tile k | w_fc2 tile k].  In a real
    model this is done once at weight-load time, not per forward pass.
    """
    H, I = w_fc.shape
    assert I % ti == 0
    nk = I // ti
    w12 = jnp.concatenate([w_fc.reshape(H, nk, ti),
                           w_fc2.reshape(H, nk, ti)], axis=2).reshape(H, 2 * I)
    b12 = jnp.concatenate([b_fc.reshape(1, nk, ti),
                           b_fc2.reshape(1, nk, ti)], axis=2).reshape(1, 2 * I)
    return w12, b12


# ----------------------------- wrapper ---------------------------------------
def jais_mlp(x, w_fc12, b_fc12, w_proj, b_proj, *, tm=256, ti=256):
    """Fused JAISMLP forward.

    x:       [S, H]    f32 (or bf16) hidden states
    w_fc12:  [H, 2I]   bf16 packed with pack_fc_weights(..., ti=ti)
    b_fc12:  [1, 2I]   f32  packed with pack_fc_weights(..., ti=ti)
    w_proj:  [I, H]    bf16
    b_proj:  [1, H]    f32
    returns  [S, H]    f32
    """
    S, H = x.shape
    I, H2 = w_proj.shape
    assert H2 == H and w_fc12.shape == (H, 2 * I) and b_fc12.shape == (1, 2 * I)
    assert H % 128 == 0

    ti = min(ti, I)                       # must match the packing tile
    assert I % ti == 0 and (2 * ti) % 128 == 0

    # Clamp the token tile to the (16-aligned) sequence length and pad S up to
    # a multiple of tm; padded rows are sliced away after the call.
    tm = max(16, min(tm, ((S + 15) // 16) * 16))
    s_pad = pl.cdiv(S, tm) * tm

    xb = x.astype(jnp.bfloat16)           # bf16 activations: half the DMA
    if s_pad != S:
        xb = jnp.pad(xb, ((0, s_pad - S), (0, 0)))

    flops = 6 * S * H * I                 # 3 matmuls
    bytes_accessed = (S * H * 2            # activations in (bf16)
                      + 3 * H * I * 2      # weights (bf16)
                      + (2 * I + H) * 4    # biases (f32)
                      + S * H * 4)         # output (f32)

    out = pl.pallas_call(
        _jais_mlp_kernel,
        out_shape=jax.ShapeDtypeStruct((s_pad, H), jnp.float32),
        grid_spec=pltpu.PrefetchScalarGridSpec(
            num_scalar_prefetch=0,
            grid=(s_pad // tm, I // ti),
            in_specs=[
                pl.BlockSpec((tm, H), lambda i, k: (i, 0)),       # activations
                pl.BlockSpec((H, 2 * ti), lambda i, k: (0, k)),   # packed c_fc|c_fc2 W
                pl.BlockSpec((1, 2 * ti), lambda i, k: (0, k)),   # packed biases
                pl.BlockSpec((ti, H), lambda i, k: (k, 0)),       # c_proj W tile
                pl.BlockSpec((1, H), lambda i, k: (0, 0)),        # c_proj bias
            ],
            out_specs=pl.BlockSpec((tm, H), lambda i, k: (i, 0)),
            scratch_shapes=[pltpu.VMEM((tm, H), jnp.float32)],    # c_proj accumulator
        ),
        compiler_params=pltpu.CompilerParams(
            dimension_semantics=("parallel", "arbitrary"),
            vmem_limit_bytes=64 * 1024 * 1024,
        ),
        cost_estimate=pl.CostEstimate(flops=flops,
                                      transcendentals=S * I,
                                      bytes_accessed=bytes_accessed),
    )(xb, w_fc12, b_fc12, w_proj, b_proj)
    return out[:S]


# ----------------------------- pure-JAX reference ----------------------------
def jais_mlp_ref(x, w_fc, b_fc, w_fc2, b_fc2, w_proj, b_proj):
    xb = x.astype(jnp.bfloat16)
    x1 = jnp.dot(xb, w_fc, preferred_element_type=jnp.float32) + b_fc
    x2 = jnp.dot(xb, w_fc2, preferred_element_type=jnp.float32) + b_fc2
    g = x1 * (x2 * jax.nn.sigmoid(x2))
    return jnp.dot(g.astype(jnp.bfloat16), w_proj,
                   preferred_element_type=jnp.float32) + b_proj


# ----------------------------- main -----------------------------------------
if __name__ == "__main__":
    # Small but lane-dense shapes.  SEQ is deliberately NOT a tile multiple to
    # exercise the padding path; INNER=2*TI exercises the 2-step inner grid.
    SEQ, HIDDEN, INNER = 50, 256, 512
    TI = 256

    key = jax.random.PRNGKey(0)
    kx, k1, k2, k3, k4, k5, k6 = jax.random.split(key, 7)

    x = 0.1 * jax.random.normal(kx, (SEQ, HIDDEN), dtype=jnp.float32)
    w_fc   = (0.02 * jax.random.normal(k1, (HIDDEN, INNER), jnp.float32)).astype(jnp.bfloat16)
    b_fc   = 0.02 * jax.random.normal(k2, (1, INNER), jnp.float32)
    w_fc2  = (0.02 * jax.random.normal(k3, (HIDDEN, INNER), jnp.float32)).astype(jnp.bfloat16)
    b_fc2  = 0.02 * jax.random.normal(k4, (1, INNER), jnp.float32)
    w_proj = (0.02 * jax.random.normal(k5, (INNER, HIDDEN), jnp.float32)).astype(jnp.bfloat16)
    b_proj = 0.02 * jax.random.normal(k6, (1, HIDDEN), jnp.float32)

    # One-time weight packing (in a real model: done at weight-load time).
    w_fc12, b_fc12 = pack_fc_weights(w_fc, b_fc, w_fc2, b_fc2, ti=TI)

    fused = jax.jit(partial(jais_mlp, tm=256, ti=TI))
    out = fused(x, w_fc12, b_fc12, w_proj, b_proj)
    jax.block_until_ready(out)

    expected = jais_mlp_ref(x, w_fc, b_fc, w_fc2, b_fc2, w_proj, b_proj)
    assert out.shape == (SEQ, HIDDEN)
    max_err = float(jnp.max(jnp.abs(out - expected)))
    assert jnp.allclose(out, expected, rtol=2e-2, atol=2e-2), max_err
    print("KERNEL_OK")
</pallas_src>

<mosaic_0001>
module attributes {stable_mosaic.version = 11 : i64} {
  func.func @_jais_mlp_kernel(%arg0: i32, %arg1: i32, %arg2: memref<64x256xbf16, #tpu.memory_space<vmem>>, %arg3: memref<256x512xbf16, #tpu.memory_space<vmem>>, %arg4: memref<1x512xf32, #tpu.memory_space<vmem>>, %arg5: memref<256x256xbf16, #tpu.memory_space<vmem>>, %arg6: memref<1x256xf32, #tpu.memory_space<vmem>>, %arg7: memref<64x256xf32, #tpu.memory_space<vmem>>, %arg8: memref<64x256xf32, #tpu.memory_space<vmem>>) attributes {dimension_semantics = [#tpu.dimension_semantics<parallel>, #tpu.dimension_semantics<arbitrary>], iteration_bounds = array<i64: 1, 2>, scalar_prefetch = 0 : i64, scratch_operands = 1 : i64, tpu.core_type = #tpu.core_type<tc>, window_params = [{transform_indices = @transform_0, window_bounds = array<i64: 64, 256>}, {transform_indices = @transform_1, window_bounds = array<i64: 256, 512>}, {transform_indices = @transform_2, window_bounds = array<i64: 1, 512>}, {transform_indices = @transform_3, window_bounds = array<i64: 256, 256>}, {pipeline_mode = #tpu.pipeline_mode<synchronous>, transform_indices = @transform_4, window_bounds = array<i64: 1, 256>}, {transform_indices = @transform_5, window_bounds = array<i64: 64, 256>}]} {
    %c0_i32 = arith.constant 0 : i32
    %0 = arith.cmpi eq, %arg1, %c0_i32 : i32
    %1 = arith.extui %0 : i1 to i32
    %c0_i32_0 = arith.constant 0 : i32
    %2 = arith.cmpi ne, %1, %c0_i32_0 : i32
    scf.if %2 {
      %cst_15 = arith.constant 0.000000e+00 : f32
      %27 = vector.broadcast %cst_15 : f32 to vector<64x256xf32>
      %c0_16 = arith.constant 0 : index
      %c0_17 = arith.constant 0 : index
      %28 = vector.load %arg8[%c0_16, %c0_17] : memref<64x256xf32, #tpu.memory_space<vmem>>, vector<64x256xf32>
      tpu.vector_store %arg8[%c0_16, %c0_17], %27 {strides = array<i32>} : memref<64x256xf32, #tpu.memory_space<vmem>>, vector<64x256xf32>,
    } else {
    }
    %c0 = arith.constant 0 : index
    %c0_1 = arith.constant 0 : index
    %3 = vector.load %arg2[%c0, %c0_1] : memref<64x256xbf16, #tpu.memory_space<vmem>>, vector<64x256xbf16>
    %c0_2 = arith.constant 0 : index
    %c0_3 = arith.constant 0 : index
    %4 = vector.load %arg3[%c0_2, %c0_3] : memref<256x512xbf16, #tpu.memory_space<vmem>>, vector<256x512xbf16>
    %cst = arith.constant dense<0.000000e+00> : vector<64x512xf32>
    %5 = tpu.matmul %3, %4, %cst {dimension_numbers = #tpu.dot_dimension_numbers<[1], [0], [0], [1], [0, 0, 1, 1], [], []>} : vector<64x256xbf16>, vector<256x512xbf16>, vector<64x512xf32> -> vector<64x512xf32>
    %c0_4 = arith.constant 0 : index
    %c0_5 = arith.constant 0 : index
    %6 = vector.load %arg4[%c0_4, %c0_5] : memref<1x512xf32, #tpu.memory_space<vmem>>, vector<1x512xf32>
    %7 = vector.broadcast %6 : vector<1x512xf32> to vector<64x512xf32>
    %8 = arith.addf %5, %7 : vector<64x512xf32>
    %9 = vector.extract_strided_slice %8 {offsets = [0, 0], sizes = [64, 256], strides = [1, 1]} : vector<64x512xf32> to vector<64x256xf32>
    %10 = vector.extract_strided_slice %8 {offsets = [0, 256], sizes = [64, 256], strides = [1, 1]} : vector<64x512xf32> to vector<64x256xf32>
    %11 = arith.negf %10 : vector<64x256xf32>
    %12 = math.exp %11 : vector<64x256xf32>
    %cst_6 = arith.constant 1.000000e+00 : f32
    %13 = vector.broadcast %cst_6 : f32 to vector<64x256xf32>
    %14 = arith.addf %13, %12 : vector<64x256xf32>
    %15 = arith.divf %13, %14 : vector<64x256xf32>
    %16 = arith.mulf %10, %15 : vector<64x256xf32>
    %17 = arith.mulf %9, %16 : vector<64x256xf32>
    %c0_7 = arith.constant 0 : index
    %c0_8 = arith.constant 0 : index
    %18 = vector.load %arg8[%c0_7, %c0_8] : memref<64x256xf32, #tpu.memory_space<vmem>>, vector<64x256xf32>
    %19 = arith.truncf %17 : vector<64x256xf32> to vector<64x256xbf16>
    %c0_9 = arith.constant 0 : index
    %c0_10 = arith.constant 0 : index
    %20 = vector.load %arg5[%c0_9, %c0_10] : memref<256x256xbf16, #tpu.memory_space<vmem>>, vector<256x256xbf16>
    %cst_11 = arith.constant dense<0.000000e+00> : vector<64x256xf32>
    %21 = tpu.matmul %19, %20, %cst_11 {dimension_numbers = #tpu.dot_dimension_numbers<[1], [0], [0], [1], [0, 0, 1, 1], [], []>} : vector<64x256xbf16>, vector<256x256xbf16>, vector<64x256xf32> -> vector<64x256xf32>
    %22 = arith.addf %18, %21 : vector<64x256xf32>
    %c0_12 = arith.constant 0 : index
    %c0_13 = arith.constant 0 : index
    %23 = vector.load %arg8[%c0_12, %c0_13] : memref<64x256xf32, #tpu.memory_space<vmem>>, vector<64x256xf32>
    tpu.vector_store %arg8[%c0_12, %c0_13], %22 {strides = array<i32>} : memref<64x256xf32, #tpu.memory_space<vmem>>, vector<64x256xf32>,
    %c1_i32 = arith.constant 1 : i32
    %24 = arith.cmpi eq, %arg1, %c1_i32 : i32
    %25 = arith.extui %24 : i1 to i32
    %c0_i32_14 = arith.constant 0 : i32
    %26 = arith.cmpi ne, %25, %c0_i32_14 : i32
    scf.if %26 {
      %c0_15 = arith.constant 0 : index
      %c0_16 = arith.constant 0 : index
      %27 = vector.load %arg8[%c0_15, %c0_16] : memref<64x256xf32, #tpu.memory_space<vmem>>, vector<64x256xf32>
      %c0_17 = arith.constant 0 : index
      %c0_18 = arith.constant 0 : index
      %28 = vector.load %arg6[%c0_17, %c0_18] : memref<1x256xf32, #tpu.memory_space<vmem>>, vector<1x256xf32>
      %29 = vector.broadcast %28 : vector<1x256xf32> to vector<64x256xf32>
      %30 = arith.addf %27, %29 : vector<64x256xf32>
      %c0_19 = arith.constant 0 : index
      %c0_20 = arith.constant 0 : index
      %31 = vector.load %arg7[%c0_19, %c0_20] : memref<64x256xf32, #tpu.memory_space<vmem>>, vector<64x256xf32>
      tpu.vector_store %arg7[%c0_19, %c0_20], %30 {strides = array<i32>} : memref<64x256xf32, #tpu.memory_space<vmem>>, vector<64x256xf32>,
    } else {
    }
    return
  }
  func.func @transform_0(%arg0: i32, %arg1: i32) -> (i32, i32) {
    %c0_i32 = arith.constant 0 : i32
    %c0_i32_0 = arith.constant 0 : i32
    return %arg0, %c0_i32 : i32, i32
  }
  func.func @transform_1(%arg0: i32, %arg1: i32) -> (i32, i32) {
    %c0_i32 = arith.constant 0 : i32
    %c0_i32_0 = arith.constant 0 : i32
    return %c0_i32, %arg1 : i32, i32
  }
  func.func @transform_2(%arg0: i32, %arg1: i32) -> (i32, i32) {
    %c0_i32 = arith.constant 0 : i32
    %c0_i32_0 = arith.constant 0 : i32
    return %c0_i32, %arg1 : i32, i32
  }
  func.func @transform_3(%arg0: i32, %arg1: i32) -> (i32, i32) {
    %c0_i32 = arith.constant 0 : i32
    %c0_i32_0 = arith.constant 0 : i32
    return %arg1, %c0_i32 : i32, i32
  }
  func.func @transform_4(%arg0: i32, %arg1: i32) -> (i32, i32) {
    %c0_i32 = arith.constant 0 : i32
    %c0_i32_0 = arith.constant 0 : i32
    %c0_i32_1 = arith.constant 0 : i32
    return %c0_i32, %c0_i32_0 : i32, i32
  }
  func.func @transform_5(%arg0: i32, %arg1: i32) -> (i32, i32) {
    %c0_i32 = arith.constant 0 : i32
    %c0_i32_0 = arith.constant 0 : i32
    return %arg0, %c0_i32 : i32, i32
  }
}

</mosaic_0001>

<llo_original>
// kernel: jais_mlp.1
$region0: #{jais_mlp.1}
  #allocation0 [shape = 'u32[]', space=smem, size = 0x4, offset = 0x4, fixed_abs, tag = 'smem constant byte address 0x4 - core index']
  #allocation1 [shape = 'u32[144,128]{1,0:T(1,128)}', space=vmem, size = 0x12000, scoped, tag = 'internal scratch']
  #allocation2 [shape = 'f32[64,256]{1,0:T(8,128)}', space=vmem, size = 0x10000, scoped, tag = 'scratch operand']
  %s0 = inlined_call_operand.hbm [shape: bf16[64,256], index: 0, kind: input, shape index: {}]
  %s1 = inlined_call_operand.hbm [shape: bf16[256,1024], index: 1, kind: input, shape index: {}]
  %s2 = inlined_call_operand.hbm [shape: f32[1,1024], index: 2, kind: input, shape index: {}]
  %s3 = inlined_call_operand.hbm [shape: bf16[512,256], index: 3, kind: input, shape index: {}]
  %s4 = inlined_call_operand.hbm [shape: f32[1,256], index: 4, kind: input, shape index: {}]
  %s5 = inlined_call_operand.hbm [shape: f32[64,256], index: 5, kind: output, shape index: {}]
  %s6 = sld [smem:[#allocation0]]
  $region81: #{jais_mlp.1} parent=0
    _
  %s8 = ssub.s32 1, %s6
  %s9 = scalar_select 0, %s8, %s6
  $region1: #{jais_mlp.1} parent=0
    #allocation3 [shape = 'u8[32768]{0}', space=vmem, size = 0x8000, scoped, tag = 'input window, operand 0, single buffered']
    #allocation4 [shape = 's32[2]{0}', space=sflag, size = 0x8, scoped, tag = 'scoped memory for jais_mlp.1']
    #allocation5 [shape = 's32[2]{0}', space=sflag, size = 0x8, scoped, tag = 'scoped memory for jais_mlp.1']
    #allocation6 [shape = 'u8[524288]{0}', space=vmem, size = 0x80000, scoped, tag = 'input window, operand 1']
    #allocation7 [shape = 's32[2]{0}', space=sflag, size = 0x8, scoped, tag = 'scoped memory for jais_mlp.1']
    #allocation8 [shape = 'u8[4096]{0}', space=vmem, size = 0x1000, scoped, tag = 'input window, operand 2']
    #allocation9 [shape = 'u8[262144]{0}', space=vmem, size = 0x40000, scoped, tag = 'input window, operand 3']
    #allocation10 [shape = 's32[2]{0}', space=sflag, size = 0x8, scoped, tag = 'scoped memory for jais_mlp.1']
    #allocation11 [shape = 'u8[1024]{0}', space=vmem, size = 0x400, scoped, tag = 'input window, operand 4, single buffered']
    #allocation12 [shape = 'u8[65536]{0}', space=vmem, size = 0x10000, scoped, tag = 'output window, operand 0, single buffered']
    %10 = vsyncpa [#allocation4], 0
    %11 = vsyncpa [#allocation7], 0
    %s12 = scalar_lea.sflag [#allocation7], 1
    %13 = vsyncpa %s12, 0
    %14 = vsyncpa [#allocation10], 0
    %s15 = scalar_lea.sflag [#allocation10], 1
    %16 = vsyncpa %s15, 0
    %17 = vsyncpa [#allocation5], 0
    loop: start=0, step=1, limit=4
    $region2: #{jais_mlp.1} parent=1 // loop_pre_header
      _
    $region3: #{jais_mlp.1} parent=1 // loop_header
      %s19 = sphi 0, %s23
      %p20 = scmp.ge.s32.totalorder %s19, 4
      %s26 = sphi 0, %s38
      %s27 = sphi 0, %s34
      %s28 = sphi 0, %s26
      %s29 = sphi 0, %s27
      %s30 = sphi 0, %s28
      %s31 = sphi 0, %s29
      %s41 = sphi 0, %s43
      %s44 = sphi 0, %s41
      %s45 = sphi 0, %s44
      %s61 = sphi 0, %s45
      %s67 = sphi 0, %s69
      %s70 = sphi 0, %s67
      %s71 = sphi 0, %s70
      %s87 = sphi 0, %s71
      %s93 = sphi 0, %s95
      %s96 = sphi 0, %s93
      %s97 = sphi 0, %s96
      %s113 = sphi 0, %s97
      %s119 = sphi 0, %s121
      %s122 = sphi 0, %s119
      %s123 = sphi 0, %s122
      %s139 = sphi 0, %s123
      %s143 = sphi 0, %s143
      %s145 = sphi 0, %s143
      %s146 = sphi 0, %s145
      %s160 = sphi 0, %s146
      %s166 = sphi 0, %s168
      %s169 = sphi 0, %s166
      %s170 = sphi 0, %s169
      %s186 = sphi 0, %s170
    $region4: #{jais_mlp.1} parent=1 // loop_header_branch
      %22 = sbr.rel (%p20) target = $region8
    $region5: #{jais_mlp.1} parent=1 // loop_body
      %s24 = ssub.s32 %s19, 1
      %s25 = ssub.s32 %s19, 2
      %s32 = sadd.s32 1, %s27
      %p33 = scmp.ge.s32.totalorder %s32, 2
      %s34 = scalar_select %p33, 0, %s32
      %s35 = sadd.s32 1, %s26
      %s36 = scalar_select %p33, %s35, %s26
      %p37 = scmp.ge.s32.totalorder %s36, 1
      %s38 = scalar_select %p37, 0, %s36
      %s39 = ssub.s32 %s26, %s38
      %p40 = scmp.eq.s32.totalorder %s39, 0
      %s42 = sadd.s32 %s41, 1
      %s43 = scalar_select %p40, %s41, %s42
      %p46 = pneg %p40
      %p47 = scmp.eq.s32.totalorder %s19, 1
      %p48 = por %p46, %p47
      %p49 = scmp.ne.s32.totalorder %s41, %s44
      %p50 = scmp.eq.s32.totalorder %s19, 0
      %p51 = por %p49, %p50
      %p52 = scmp.ne.s32.totalorder %s41, %s44
      %p53 = scmp.eq.s32.totalorder %s24, 1
      %p54 = por %p52, %p53
      %p55 = scmp.ne.s32.totalorder %s44, %s45
      %p56 = scmp.eq.s32.totalorder %s24, 0
      %p57 = por %p55, %p56
      %p58 = scmp.ne.s32.totalorder %s44, %s45
      %p59 = scmp.eq.s32.totalorder %s25, 1
      %p60 = por %p58, %p59
      %p62 = scmp.ne.s32.totalorder %s45, %s61
      %p63 = scmp.eq.s32.totalorder %s25, 0
      %p64 = por %p62, %p63
      %s65 = ssub.s32 %s27, %s34
      %p66 = scmp.eq.s32.totalorder %s65, 0
      %s68 = sadd.s32 %s67, 1
      %s69 = scalar_select %p66, %s67, %s68
      %p72 = pneg %p66
      %p73 = scmp.eq.s32.totalorder %s19, 1
      %p74 = por %p72, %p73
      %p75 = scmp.ne.s32.totalorder %s67, %s70
      %p76 = scmp.eq.s32.totalorder %s19, 0
      %p77 = por %p75, %p76
      %p78 = scmp.ne.s32.totalorder %s67, %s70
      %p79 = scmp.eq.s32.totalorder %s24, 1
      %p80 = por %p78, %p79
      %p81 = scmp.ne.s32.totalorder %s70, %s71
      %p82 = scmp.eq.s32.totalorder %s24, 0
      %p83 = por %p81, %p82
      %p84 = scmp.ne.s32.totalorder %s70, %s71
      %p85 = scmp.eq.s32.totalorder %s25, 1
      %p86 = por %p84, %p85
      %p88 = scmp.ne.s32.totalorder %s71, %s87
      %p89 = scmp.eq.s32.totalorder %s25, 0
      %p90 = por %p88, %p89
      %s91 = ssub.s32 %s27, %s34
      %p92 = scmp.eq.s32.totalorder %s91, 0
      %s94 = sadd.s32 %s93, 1
      %s95 = scalar_select %p92, %s93, %s94
      %p98 = pneg %p92
      %p99 = scmp.eq.s32.totalorder %s19, 1
      %p100 = por %p98, %p99
      %p101 = scmp.ne.s32.totalorder %s93, %s96
      %p102 = scmp.eq.s32.totalorder %s19, 0
      %p103 = por %p101, %p102
      %p104 = scmp.ne.s32.totalorder %s93, %s96
      %p105 = scmp.eq.s32.totalorder %s24, 1
      %p106 = por %p104, %p105
      %p107 = scmp.ne.s32.totalorder %s96, %s97
      %p108 = scmp.eq.s32.totalorder %s24, 0
      %p109 = por %p107, %p108
      %p110 = scmp.ne.s32.totalorder %s96, %s97
      %p111 = scmp.eq.s32.totalorder %s25, 1
      %p112 = por %p110, %p111
      %p114 = scmp.ne.s32.totalorder %s97, %s113
      %p115 = scmp.eq.s32.totalorder %s25, 0
      %p116 = por %p114, %p115
      %s117 = ssub.s32 %s27, %s34
      %p118 = scmp.eq.s32.totalorder %s117, 0
      %s120 = sadd.s32 %s119, 1
      %s121 = scalar_select %p118, %s119, %s120
      %p124 = pneg %p118
      %p125 = scmp.eq.s32.totalorder %s19, 1
      %p126 = por %p124, %p125
      %p127 = scmp.ne.s32.totalorder %s119, %s122
      %p128 = scmp.eq.s32.totalorder %s19, 0
      %p129 = por %p127, %p128
      %p130 = scmp.ne.s32.totalorder %s119, %s122
      %p131 = scmp.eq.s32.totalorder %s24, 1
      %p132 = por %p130, %p131
      %p133 = scmp.ne.s32.totalorder %s122, %s123
      %p134 = scmp.eq.s32.totalorder %s24, 0
      %p135 = por %p133, %p134
      %p136 = scmp.ne.s32.totalorder %s122, %s123
      %p137 = scmp.eq.s32.totalorder %s25, 1
      %p138 = por %p136, %p137
      %p140 = scmp.ne.s32.totalorder %s123, %s139
      %p141 = scmp.eq.s32.totalorder %s25, 0
      %p142 = por %p140, %p141
      %s144 = sadd.s32 %s143, 1
      %p147 = scmp.eq.s32.totalorder %s19, 1
      %p148 = scmp.ne.s32.totalorder %s143, %s145
      %p149 = scmp.eq.s32.totalorder %s19, 0
      %p150 = por %p148, %p149
      %p151 = scmp.ne.s32.totalorder %s143, %s145
      %p152 = scmp.eq.s32.totalorder %s24, 1
      %p153 = por %p151, %p152
      %p154 = scmp.ne.s32.totalorder %s145, %s146
      %p155 = scmp.eq.s32.totalorder %s24, 0
      %p156 = por %p154, %p155
      %p157 = scmp.ne.s32.totalorder %s145, %s146
      %p158 = scmp.eq.s32.totalorder %s25, 1
      %p159 = por %p157, %p158
      %p161 = scmp.ne.s32.totalorder %s146, %s160
      %p162 = scmp.eq.s32.totalorder %s25, 0
      %p163 = por %p161, %p162
      %s164 = ssub.s32 %s26, %s38
      %p165 = scmp.eq.s32.totalorder %s164, 0
      %s167 = sadd.s32 %s166, 1
      %s168 = scalar_select %p165, %s166, %s167
      %p171 = pneg %p165
      %p172 = scmp.eq.s32.totalorder %s19, 1
      %p173 = por %p171, %p172
      %p174 = scmp.ne.s32.totalorder %s166, %s169
      %p175 = scmp.eq.s32.totalorder %s19, 0
      %p176 = por %p174, %p175
      %p177 = scmp.ne.s32.totalorder %s166, %s169
      %p178 = scmp.eq.s32.totalorder %s24, 1
      %p179 = por %p177, %p178
      %p180 = scmp.ne.s32.totalorder %s169, %s170
      %p181 = scmp.eq.s32.totalorder %s24, 0
      %p182 = por %p180, %p181
      %p183 = scmp.ne.s32.totalorder %s169, %s170
      %p184 = scmp.eq.s32.totalorder %s25, 1
      %p185 = por %p183, %p184
      %p187 = scmp.ne.s32.totalorder %s170, %s186
      %p188 = scmp.eq.s32.totalorder %s25, 0
      %p189 = por %p187, %p188
      %p190 = scmp.le.s32.totalorder 1, %s19
      %p191 = scmp.lt.s32.totalorder %s19, 3
      %p192 = pnand %p190, %p191
      %p193 = pneg %p192
      // Predicated region
      $region9: #{jais_mlp.1} parent=5 // pred_check
        _
      $region10: #{jais_mlp.1} parent=5 // pred_check_branch
        %195 = sbr.rel (%p192) target = $region12
      $region11: #{jais_mlp.1} parent=5 // pred_region
        %s196 = ssub.s32 %s19, 1
        // Predicated region
        $region13: #{jais_mlp.1} parent=11 // pred_check
          %p197 = pneg %p57
        $region14: #{jais_mlp.1} parent=11 // pred_check_branch
          %199 = sbr.rel (%p197) target = $region16
        $region15: #{jais_mlp.1} parent=11 // pred_region
          %s200 = smul.u32 8, %s28
          %s202 = ssub.s32 1024, 1024
          %203 = vsyncadd [#allocation4], %s202
          %s204 = smul.addr %s200, 2
          %s205 = smul.addr %s204, 64
          %s206 = scalar_lea.hbm %s0, %s205
          %s207 = sshll.u32 [#allocation3], 4
          %s208 = int_to_ptr.vmem [resolvable:$true] %s207
          %213 = dma.hbm_to_vmem [thread:$0]  %s206, 1024, %s208, [#allocation4], 128, 128, 8
        $region16: #{jais_mlp.1} parent=11 // pred_fallthru
          _
        // Predicated region
        $region17: #{jais_mlp.1} parent=11 // pred_check
          %p214 = pneg %p156
        $region18: #{jais_mlp.1} parent=11 // pred_check_branch
          %216 = sbr.rel (%p214) target = $region20
        $region19: #{jais_mlp.1} parent=11 // pred_region
          %s218 = ssub.s32 32, 32
          %219 = vsyncadd [#allocation10], %s218
          %s221 = sshll.u32 [#allocation11], 4
          %s222 = int_to_ptr.vmem [resolvable:$true] %s221
          %224 = dma.hbm_to_vmem [thread:$0]  %s4, 32, %s222, [#allocation10]
        $region20: #{jais_mlp.1} parent=11 // pred_fallthru
          _
      $region12: #{jais_mlp.1} parent=5 // pred_fallthru
        _
      %p225 = scmp.lt.s32.totalorder %s19, 2
      // Predicated region
      $region21: #{jais_mlp.1} parent=5 // pred_check
        %p226 = pneg %p225
      $region22: #{jais_mlp.1} parent=5 // pred_check_branch
        %228 = sbr.rel (%p226) target = $region24
      $region23: #{jais_mlp.1} parent=5 // pred_region
        // Predicated region
        $region25: #{jais_mlp.1} parent=23 // pred_check
          %p229 = pneg %p77
        $region26: #{jais_mlp.1} parent=23 // pred_check_branch
          %231 = sbr.rel (%p229) target = $region28
        $region27: #{jais_mlp.1} parent=23 // pred_region
          %s232 = sand.u32 %s19, 1
          %s233 = scalar_lea.sflag [#allocation7], %s232
          %s234 = sand.u32 %s67, 1
          %s235 = smul.addr %s234, 512
          %s236 = scalar_lea.vmem [#allocation6], %s235
          %s237 = smul.u32 4, %s27
          %s239 = ssub.s32 8192, 8192
          %240 = vsyncadd %s233, %s239
          %s241 = smul.addr %s237, 64
          %s242 = scalar_lea.hbm %s1, %s241
          %s243 = sshll.u32 %s236, 4
          %s244 = int_to_ptr.vmem [resolvable:$true] %s243
          %249 = dma.hbm_to_vmem [thread:$0]  %s242, 8192, %s244, %s233, 512, 256, 16
        $region28: #{jais_mlp.1} parent=23 // pred_fallthru
          _
        // Predicated region
        $region29: #{jais_mlp.1} parent=23 // pred_check
          %p250 = pneg %p103
        $region30: #{jais_mlp.1} parent=23 // pred_check_branch
          %252 = sbr.rel (%p250) target = $region32
        $region31: #{jais_mlp.1} parent=23 // pred_region
          %s253 = sand.u32 %s19, 1
          %s254 = scalar_lea.sflag [#allocation7], %s253
          %s255 = sand.u32 %s93, 1
          %s256 = smul.addr %s255, 4
          %s257 = scalar_lea.vmem [#allocation8], %s256
          %s258 = smul.u32 4, %s27
          %s260 = ssub.s32 64, 64
          %261 = vsyncadd %s254, %s260
          %s262 = smul.addr %s258, 16
          %s263 = scalar_lea.hbm %s2, %s262
          %s265 = sshll.u32 %s257, 4
          %s266 = int_to_ptr.vmem [resolvable:$true] %s265
          %268 = dma.hbm_to_vmem [thread:$0]  %s263, 64, %s266, %s254
        $region32: #{jais_mlp.1} parent=23 // pred_fallthru
          _
        // Predicated region
        $region33: #{jais_mlp.1} parent=23 // pred_check
          %p269 = pneg %p129
        $region34: #{jais_mlp.1} parent=23 // pred_check_branch
          %271 = sbr.rel (%p269) target = $region36
        $region35: #{jais_mlp.1} parent=23 // pred_region
          %s272 = sand.u32 %s19, 1
          %s273 = scalar_lea.sflag [#allocation10], %s272
          %s274 = sand.u32 %s119, 1
          %s275 = smul.addr %s274, 256
          %s276 = scalar_lea.vmem [#allocation9], %s275
          %s277 = smul.u32 32, %s27
          %s279 = ssub.s32 4096, 4096
          %280 = vsyncadd %s273, %s279
          %s281 = smul.addr %s277, 2
          %s282 = smul.addr %s281, 64
          %s283 = scalar_lea.hbm %s3, %s282
          %s284 = sshll.u32 %s276, 4
          %s285 = int_to_ptr.vmem [resolvable:$true] %s284
          %290 = dma.hbm_to_vmem [thread:$0]  %s283, 4096, %s285, %s273, 128, 128, 8
        $region36: #{jais_mlp.1} parent=23 // pred_fallthru
          _
      $region24: #{jais_mlp.1} parent=5 // pred_fallthru
        _
      %p291 = scmp.le.s32.totalorder 1, %s19
      %p292 = scmp.lt.s32.totalorder %s19, 3
      %p293 = pnand %p291, %p292
      %p294 = pneg %p293
      // Predicated region
      $region37: #{jais_mlp.1} parent=5 // pred_check
        _
      $region38: #{jais_mlp.1} parent=5 // pred_check_branch
        %296 = sbr.rel (%p293) target = $region40
      $region39: #{jais_mlp.1} parent=5 // pred_region
        %s297 = ssub.s32 %s19, 1
        // Predicated region
        $region41: #{jais_mlp.1} parent=39 // pred_check
          %p298 = pneg %p57
        $region42: #{jais_mlp.1} parent=39 // pred_check_branch
          %300 = sbr.rel (%p298) target = $region44
        $region43: #{jais_mlp.1} parent=39 // pred_region
          %301 = dma.done [#allocation4], 1024
        $region44: #{jais_mlp.1} parent=39 // pred_fallthru
          _
        %s302 = sand.u32 %s24, 1
        %s303 = scalar_lea.sflag [#allocation7], %s302
        %s304 = sand.u32 %s70, 1
        %s305 = smul.addr %s304, 512
        %s306 = scalar_lea.vmem [#allocation6], %s305
        // Predicated region
        $region45: #{jais_mlp.1} parent=39 // pred_check
          %p307 = pneg %p83
        $region46: #{jais_mlp.1} parent=39 // pred_check_branch
          %309 = sbr.rel (%p307) target = $region48
        $region47: #{jais_mlp.1} parent=39 // pred_region
          %310 = dma.done %s303, 8192
        $region48: #{jais_mlp.1} parent=39 // pred_fallthru
          _
        %s311 = sand.u32 %s24, 1
        %s312 = scalar_lea.sflag [#allocation7], %s311
        %s313 = sand.u32 %s96, 1
        %s314 = smul.addr %s313, 4
        %s315 = scalar_lea.vmem [#allocation8], %s314
        // Predicated region
        $region49: #{jais_mlp.1} parent=39 // pred_check
          %p316 = pneg %p109
        $region50: #{jais_mlp.1} parent=39 // pred_check_branch
          %318 = sbr.rel (%p316) target = $region52
        $region51: #{jais_mlp.1} parent=39 // pred_region
          %319 = dma.done %s312, 64
        $region52: #{jais_mlp.1} parent=39 // pred_fallthru
          _
        %s320 = sand.u32 %s24, 1
        %s321 = scalar_lea.sflag [#allocation10], %s320
        %s322 = sand.u32 %s122, 1
        %s323 = smul.addr %s322, 256
        %s324 = scalar_lea.vmem [#allocation9], %s323
        // Predicated region
        $region53: #{jais_mlp.1} parent=39 // pred_check
          %p325 = pneg %p135
        $region54: #{jais_mlp.1} parent=39 // pred_check_branch
          %327 = sbr.rel (%p325) target = $region56
        $region55: #{jais_mlp.1} parent=39 // pred_region
          %328 = dma.done %s321, 4096
        $region56: #{jais_mlp.1} parent=39 // pred_fallthru
          _
        // Predicated region
        $region57: #{jais_mlp.1} parent=39 // pred_check
          %p329 = pneg %p156
        $region58: #{jais_mlp.1} parent=39 // pred_check_branch
          %331 = sbr.rel (%p329) target = $region60
        $region59: #{jais_mlp.1} parent=39 // pred_region
          %332 = dma.done [#allocation10], 32
        $region60: #{jais_mlp.1} parent=39 // pred_fallthru
          _
        %p333 = pneg %p57
        %p334 = pneg %p54
        %s335 = sand.u32 %s24, 1
        %s336 = scalar_lea.sflag [#allocation7], %s335
        %s337 = sand.u32 %s70, 1
        %s338 = smul.addr %s337, 512
        %s339 = scalar_lea.vmem [#allocation6], %s338
        %p340 = pneg %p83
        %p341 = pneg %p80
        %s342 = sand.u32 %s24, 1
        %s343 = scalar_lea.sflag [#allocation7], %s342
        %s344 = sand.u32 %s96, 1
        %s345 = smul.addr %s344, 4
        %s346 = scalar_lea.vmem [#allocation8], %s345
        %p347 = pneg %p109
        %p348 = pneg %p106
        %s349 = sand.u32 %s24, 1
        %s350 = scalar_lea.sflag [#allocation10], %s349
        %s351 = sand.u32 %s122, 1
        %s352 = smul.addr %s351, 256
        %s353 = scalar_lea.vmem [#allocation9], %s352
        %p354 = pneg %p135
        %p355 = pneg %p132
        %p356 = pneg %p156
        %p357 = pneg %p153
        %p358 = pneg %p182
        %p359 = pneg %p179
        %s360 = smul.u32 8, %s28
        %s361 = smul.u32 4, %s29
        %s362 = smul.u32 4, %s29
        %s363 = smul.u32 32, %s29
        %s364 = smul.u32 8, %s28
        %p365 = scmp.eq.s32.totalorder %s29, 0
        // Predicated region
        $region61: #{jais_mlp.1} parent=39 // pred_check
          %p366 = pneg %p365
        $region62: #{jais_mlp.1} parent=39 // pred_check_branch
          %368 = sbr.rel (%p366) target = $region64
        $region63: #{jais_mlp.1} parent=39 // pred_region
          %369 = vst [vmem:[#allocation2] sm:$0xff] 0.0
          %370 = vst [vmem:[#allocation2 + $0x8] sm:$0xff] 0.0
          %371 = vst [vmem:[#allocation2 + $0x10] sm:$0xff] 0.0
          %372 = vst [vmem:[#allocation2 + $0x18] sm:$0xff] 0.0
          %373 = vst [vmem:[#allocation2 + $0x20] sm:$0xff] 0.0
          %374 = vst [vmem:[#allocation2 + $0x28] sm:$0xff] 0.0
          %375 = vst [vmem:[#allocation2 + $0x30] sm:$0xff] 0.0
          %376 = vst [vmem:[#allocation2 + $0x38] sm:$0xff] 0.0
          %377 = vst [vmem:[#allocation2 + $0x40] sm:$0xff] 0.0
          %378 = vst [vmem:[#allocation2 + $0x48] sm:$0xff] 0.0
          %379 = vst [vmem:[#allocation2 + $0x50] sm:$0xff] 0.0
          %380 = vst [vmem:[#allocation2 + $0x58] sm:$0xff] 0.0
          %381 = vst [vmem:[#allocation2 + $0x60] sm:$0xff] 0.0
          %382 = vst [vmem:[#allocation2 + $0x68] sm:$0xff] 0.0
          %383 = vst [vmem:[#allocation2 + $0x70] sm:$0xff] 0.0
          %384 = vst [vmem:[#allocation2 + $0x78] sm:$0xff] 0.0
        $region64: #{jais_mlp.1} parent=39 // pred_fallthru
          _
        %v385 = vld [vmem:[#allocation3] sm:$0xff]
        %v386 = vld [vmem:[#allocation3 + $0x8] sm:$0xff]
        %v387 = vld [vmem:[#allocation3 + $0x10] sm:$0xff]
        %v388 = vld [vmem:[#allocation3 + $0x18] sm:$0xff]
        %v389 = vld [vmem:[#allocation3 + $0x20] sm:$0xff]
        %v390 = vld [vmem:[#allocation3 + $0x28] sm:$0xff]
        %v391 = vld [vmem:[#allocation3 + $0x30] sm:$0xff]
        %v392 = vld [vmem:[#allocation3 + $0x38] sm:$0xff]
        %v393 = vld [vmem:[%s306] sm:$0xff]
        %v394 = vld [vmem:[%s306 + $0x8] sm:$0xff]
        %v395 = vld [vmem:[%s306 + $0x10] sm:$0xff]
        %v396 = vld [vmem:[%s306 + $0x18] sm:$0xff]
        %v397 = vld [vmem:[%s306 + $0x20] sm:$0xff]
        %v398 = vld [vmem:[%s306 + $0x28] sm:$0xff]
        %v399 = vld [vmem:[%s306 + $0x30] sm:$0xff]
        %v400 = vld [vmem:[%s306 + $0x38] sm:$0xff]
        %v401 = vld [vmem:[%s306 + $0x40] sm:$0xff]
        %v402 = vld [vmem:[%s306 + $0x48] sm:$0xff]
        %v403 = vld [vmem:[%s306 + $0x50] sm:$0xff]
        %v404 = vld [vmem:[%s306 + $0x58] sm:$0xff]
        %v405 = vld [vmem:[%s306 + $0x60] sm:$0xff]
        %v406 = vld [vmem:[%s306 + $0x68] sm:$0xff]
        %v407 = vld [vmem:[%s306 + $0x70] sm:$0xff]
        %v408 = vld [vmem:[%s306 + $0x78] sm:$0xff]
        %v409 = vld [vmem:[%s306 + $0x80] sm:$0xff]
        %v410 = vld [vmem:[%s306 + $0x88] sm:$0xff]
        %v411 = vld [vmem:[%s306 + $0x90] sm:$0xff]
        %v412 = vld [vmem:[%s306 + $0x98] sm:$0xff]
        %v413 = vld [vmem:[%s306 + $0xa0] sm:$0xff]
        %v414 = vld [vmem:[%s306 + $0xa8] sm:$0xff]
        %v415 = vld [vmem:[%s306 + $0xb0] sm:$0xff]
        %v416 = vld [vmem:[%s306 + $0xb8] sm:$0xff]
        %v417 = vld [vmem:[%s306 + $0xc0] sm:$0xff]
        %v418 = vld [vmem:[%s306 + $0xc8] sm:$0xff]
        %v419 = vld [vmem:[%s306 + $0xd0] sm:$0xff]
        %v420 = vld [vmem:[%s306 + $0xd8] sm:$0xff]
        %v421 = vld [vmem:[%s306 + $0xe0] sm:$0xff]
        %v422 = vld [vmem:[%s306 + $0xe8] sm:$0xff]
        %v423 = vld [vmem:[%s306 + $0xf0] sm:$0xff]
        %v424 = vld [vmem:[%s306 + $0xf8] sm:$0xff]
        %v425 = vld [vmem:[%s306 + $0x100] sm:$0xff]
        %v426 = vld [vmem:[%s306 + $0x108] sm:$0xff]
        %v427 = vld [vmem:[%s306 + $0x110] sm:$0xff]
        %v428 = vld [vmem:[%s306 + $0x118] sm:$0xff]
        %v429 = vld [vmem:[%s306 + $0x120] sm:$0xff]
        %v430 = vld [vmem:[%s306 + $0x128] sm:$0xff]
        %v431 = vld [vmem:[%s306 + $0x130] sm:$0xff]
        %v432 = vld [vmem:[%s306 + $0x138] sm:$0xff]
        %v433 = vld [vmem:[%s306 + $0x140] sm:$0xff]
        %v434 = vld [vmem:[%s306 + $0x148] sm:$0xff]
        %v435 = vld [vmem:[%s306 + $0x150] sm:$0xff]
        %v436 = vld [vmem:[%s306 + $0x158] sm:$0xff]
        %v437 = vld [vmem:[%s306 + $0x160] sm:$0xff]
        %v438 = vld [vmem:[%s306 + $0x168] sm:$0xff]
        %v439 = vld [vmem:[%s306 + $0x170] sm:$0xff]
        %v440 = vld [vmem:[%s306 + $0x178] sm:$0xff]
        %v441 = vld [vmem:[%s306 + $0x180] sm:$0xff]
        %v442 = vld [vmem:[%s306 + $0x188] sm:$0xff]
        %v443 = vld [vmem:[%s306 + $0x190] sm:$0xff]
        %v444 = vld [vmem:[%s306 + $0x198] sm:$0xff]
        %v445 = vld [vmem:[%s306 + $0x1a0] sm:$0xff]
        %v446 = vld [vmem:[%s306 + $0x1a8] sm:$0xff]
        %v447 = vld [vmem:[%s306 + $0x1b0] sm:$0xff]
        %v448 = vld [vmem:[%s306 + $0x1b8] sm:$0xff]
        %v449 = vld [vmem:[%s306 + $0x1c0] sm:$0xff]
        %v450 = vld [vmem:[%s306 + $0x1c8] sm:$0xff]
        %v451 = vld [vmem:[%s306 + $0x1d0] sm:$0xff]
        %v452 = vld [vmem:[%s306 + $0x1d8] sm:$0xff]
        %v453 = vld [vmem:[%s306 + $0x1e0] sm:$0xff]
        %v454 = vld [vmem:[%s306 + $0x1e8] sm:$0xff]
        %v455 = vld [vmem:[%s306 + $0x1f0] sm:$0xff]
        %v456 = vld [vmem:[%s306 + $0x1f8] sm:$0xff]
        %v457 = vld [vmem:[%s315] sm:$0xf]
        %v459 = vlaneseq
        %v460 = vshrl.u32 %v459, 7
        %v461 = vsub.s32 0, %v460
        %v462 = vrot.slane %v457, %v461
        %v463 = vlaneseq
        %v464 = vshrl.u32 %v463, 7
        %v465 = vsub.s32 1, %v464
        %v466 = vrot.slane %v457, %v465
        %v467 = vlaneseq
        %v468 = vshrl.u32 %v467, 7
        %v469 = vsub.s32 2, %v468
        %v470 = vrot.slane %v457, %v469
        %v471 = vlaneseq
        %v472 = vshrl.u32 %v471, 7
        %v473 = vsub.s32 3, %v472
        %v474 = vrot.slane %v457, %v473
        %v487 = vunpack.c.l.b16 %v385
        %v488 = vunpack.c.h.b16 %v385
        %v489 = vunpack.c.l.b16 %v386
        %v490 = vunpack.c.h.b16 %v386
        %v491 = vunpack.c.l.b16 %v387
        %v492 = vunpack.c.h.b16 %v387
        %v493 = vunpack.c.l.b16 %v388
        %v494 = vunpack.c.h.b16 %v388
        %v495 = vunpack.c.l.b16 %v389
        %v496 = vunpack.c.h.b16 %v389
        %v497 = vunpack.c.l.b16 %v390
        %v498 = vunpack.c.h.b16 %v390
        %v499 = vunpack.c.l.b16 %v391
        %v500 = vunpack.c.h.b16 %v391
        %v501 = vunpack.c.l.b16 %v392
        %v502 = vunpack.c.h.b16 %v392
        %v503 = vpack.c.b16 %v489, %v487
        %v504 = vpack.c.b16 %v490, %v488
        %v505 = vpack.c.b16 %v493, %v491
        %v506 = vpack.c.b16 %v494, %v492
        %v507 = vpack.c.b16 %v497, %v495
        %v508 = vpack.c.b16 %v498, %v496
        %v509 = vpack.c.b16 %v501, %v499
        %v510 = vpack.c.b16 %v502, %v500
        %v583 = vunpack.c.l.b16 %v393
        %v584 = vunpack.c.h.b16 %v393
        %v585 = vunpack.c.l.b16 %v394
        %v586 = vunpack.c.h.b16 %v394
        %v587 = vunpack.c.l.b16 %v395
        %v588 = vunpack.c.h.b16 %v395
        %v589 = vunpack.c.l.b16 %v396
        %v590 = vunpack.c.h.b16 %v396
        %v591 = vunpack.c.l.b16 %v397
        %v592 = vunpack.c.h.b16 %v397
        %v593 = vunpack.c.l.b16 %v398
        %v594 = vunpack.c.h.b16 %v398
        %v595 = vunpack.c.l.b16 %v399
        %v596 = vunpack.c.h.b16 %v399
        %v597 = vunpack.c.l.b16 %v400
        %v598 = vunpack.c.h.b16 %v400
        %v599 = vunpack.c.l.b16 %v401
        %v600 = vunpack.c.h.b16 %v401
        %v601 = vunpack.c.l.b16 %v402
        %v602 = vunpack.c.h.b16 %v402
        %v603 = vunpack.c.l.b16 %v403
        %v604 = vunpack.c.h.b16 %v403
        %v605 = vunpack.c.l.b16 %v404
        %v606 = vunpack.c.h.b16 %v404
        %v607 = vunpack.c.l.b16 %v405
        %v608 = vunpack.c.h.b16 %v405
        %v609 = vunpack.c.l.b16 %v406
        %v610 = vunpack.c.h.b16 %v406
        %v611 = vunpack.c.l.b16 %v407
        %v612 = vunpack.c.h.b16 %v407
        %v613 = vunpack.c.l.b16 %v408
        %v614 = vunpack.c.h.b16 %v408
        %v615 = vunpack.c.l.b16 %v409
        %v616 = vunpack.c.h.b16 %v409
        %v617 = vunpack.c.l.b16 %v410
        %v618 = vunpack.c.h.b16 %v410
        %v619 = vunpack.c.l.b16 %v411
        %v620 = vunpack.c.h.b16 %v411
        %v621 = vunpack.c.l.b16 %v412
        %v622 = vunpack.c.h.b16 %v412
        %v623 = vunpack.c.l.b16 %v413
        %v624 = vunpack.c.h.b16 %v413
        %v625 = vunpack.c.l.b16 %v414
        %v626 = vunpack.c.h.b16 %v414
        %v627 = vunpack.c.l.b16 %v415
        %v628 = vunpack.c.h.b16 %v415
        %v629 = vunpack.c.l.b16 %v416
        %v630 = vunpack.c.h.b16 %v416
        %v631 = vunpack.c.l.b16 %v417
        %v632 = vunpack.c.h.b16 %v417
        %v633 = vunpack.c.l.b16 %v418
        %v634 = vunpack.c.h.b16 %v418
        %v635 = vunpack.c.l.b16 %v419
        %v636 = vunpack.c.h.b16 %v419
        %v637 = vunpack.c.l.b16 %v420
        %v638 = vunpack.c.h.b16 %v420
        %v639 = vunpack.c.l.b16 %v421
        %v640 = vunpack.c.h.b16 %v421
        %v641 = vunpack.c.l.b16 %v422
        %v642 = vunpack.c.h.b16 %v422
        %v643 = vunpack.c.l.b16 %v423
        %v644 = vunpack.c.h.b16 %v423
        %v645 = vunpack.c.l.b16 %v424
        %v646 = vunpack.c.h.b16 %v424
        %v647 = vunpack.c.l.b16 %v425
        %v648 = vunpack.c.h.b16 %v425
        %v649 = vunpack.c.l.b16 %v426
        %v650 = vunpack.c.h.b16 %v426
        %v651 = vunpack.c.l.b16 %v427
        %v652 = vunpack.c.h.b16 %v427
        %v653 = vunpack.c.l.b16 %v428
        %v654 = vunpack.c.h.b16 %v428
        %v655 = vunpack.c.l.b16 %v429
        %v656 = vunpack.c.h.b16 %v429
        %v657 = vunpack.c.l.b16 %v430
        %v658 = vunpack.c.h.b16 %v430
        %v659 = vunpack.c.l.b16 %v431
        %v660 = vunpack.c.h.b16 %v431
        %v661 = vunpack.c.l.b16 %v432
        %v662 = vunpack.c.h.b16 %v432
        %v663 = vunpack.c.l.b16 %v433
        %v664 = vunpack.c.h.b16 %v433
        %v665 = vunpack.c.l.b16 %v434
        %v666 = vunpack.c.h.b16 %v434
        %v667 = vunpack.c.l.b16 %v435
        %v668 = vunpack.c.h.b16 %v435
        %v669 = vunpack.c.l.b16 %v436
        %v670 = vunpack.c.h.b16 %v436
        %v671 = vunpack.c.l.b16 %v437
        %v672 = vunpack.c.h.b16 %v437
        %v673 = vunpack.c.l.b16 %v438
        %v674 = vunpack.c.h.b16 %v438
        %v675 = vunpack.c.l.b16 %v439
        %v676 = vunpack.c.h.b16 %v439
        %v677 = vunpack.c.l.b16 %v440
        %v678 = vunpack.c.h.b16 %v440
        %v679 = vunpack.c.l.b16 %v441
        %v680 = vunpack.c.h.b16 %v441
        %v681 = vunpack.c.l.b16 %v442
        %v682 = vunpack.c.h.b16 %v442
        %v683 = vunpack.c.l.b16 %v443
        %v684 = vunpack.c.h.b16 %v443
        %v685 = vunpack.c.l.b16 %v444
        %v686 = vunpack.c.h.b16 %v444
        %v687 = vunpack.c.l.b16 %v445
        %v688 = vunpack.c.h.b16 %v445
        %v689 = vunpack.c.l.b16 %v446
        %v690 = vunpack.c.h.b16 %v446
        %v691 = vunpack.c.l.b16 %v447
        %v692 = vunpack.c.h.b16 %v447
        %v693 = vunpack.c.l.b16 %v448
        %v694 = vunpack.c.h.b16 %v448
        %v695 = vunpack.c.l.b16 %v449
        %v696 = vunpack.c.h.b16 %v449
        %v697 = vunpack.c.l.b16 %v450
        %v698 = vunpack.c.h.b16 %v450
        %v699 = vunpack.c.l.b16 %v451
        %v700 = vunpack.c.h.b16 %v451
        %v701 = vunpack.c.l.b16 %v452
        %v702 = vunpack.c.h.b16 %v452
        %v703 = vunpack.c.l.b16 %v453
        %v704 = vunpack.c.h.b16 %v453
        %v705 = vunpack.c.l.b16 %v454
        %v706 = vunpack.c.h.b16 %v454
        %v707 = vunpack.c.l.b16 %v455
        %v708 = vunpack.c.h.b16 %v455
        %v709 = vunpack.c.l.b16 %v456
        %v710 = vunpack.c.h.b16 %v456
        %v711 = vpack.c.b16 %v587, %v583
        %v712 = vpack.c.b16 %v588, %v584
        %v713 = vpack.c.b16 %v589, %v585
        %v714 = vpack.c.b16 %v590, %v586
        %v715 = vpack.c.b16 %v595, %v591
        %v716 = vpack.c.b16 %v596, %v592
        %v717 = vpack.c.b16 %v597, %v593
        %v718 = vpack.c.b16 %v598, %v594
        %v719 = vpack.c.b16 %v603, %v599
        %v720 = vpack.c.b16 %v604, %v600
        %v721 = vpack.c.b16 %v605, %v601
        %v722 = vpack.c.b16 %v606, %v602
        %v723 = vpack.c.b16 %v611, %v607
        %v724 = vpack.c.b16 %v612, %v608
        %v725 = vpack.c.b16 %v613, %v609
        %v726 = vpack.c.b16 %v614, %v610
        %v727 = vpack.c.b16 %v619, %v615
        %v728 = vpack.c.b16 %v620, %v616
        %v729 = vpack.c.b16 %v621, %v617
        %v730 = vpack.c.b16 %v622, %v618
        %v731 = vpack.c.b16 %v627, %v623
        %v732 = vpack.c.b16 %v628, %v624
        %v733 = vpack.c.b16 %v629, %v625
        %v734 = vpack.c.b16 %v630, %v626
        %v735 = vpack.c.b16 %v635, %v631
        %v736 = vpack.c.b16 %v636, %v632
        %v737 = vpack.c.b16 %v637, %v633
        %v738 = vpack.c.b16 %v638, %v634
        %v739 = vpack.c.b16 %v643, %v639
        %v740 = vpack.c.b16 %v644, %v640
        %v741 = vpack.c.b16 %v645, %v641
        %v742 = vpack.c.b16 %v646, %v642
        %v743 = vpack.c.b16 %v651, %v647
        %v744 = vpack.c.b16 %v652, %v648
        %v745 = vpack.c.b16 %v653, %v649
        %v746 = vpack.c.b16 %v654, %v650
        %v747 = vpack.c.b16 %v659, %v655
        %v748 = vpack.c.b16 %v660, %v656
        %v749 = vpack.c.b16 %v661, %v657
        %v750 = vpack.c.b16 %v662, %v658
        %v751 = vpack.c.b16 %v667, %v663
        %v752 = vpack.c.b16 %v668, %v664
        %v753 = vpack.c.b16 %v669, %v665
        %v754 = vpack.c.b16 %v670, %v666
        %v755 = vpack.c.b16 %v675, %v671
        %v756 = vpack.c.b16 %v676, %v672
        %v757 = vpack.c.b16 %v677, %v673
        %v758 = vpack.c.b16 %v678, %v674
        %v759 = vpack.c.b16 %v683, %v679
        %v760 = vpack.c.b16 %v684, %v680
        %v761 = vpack.c.b16 %v685, %v681
        %v762 = vpack.c.b16 %v686, %v682
        %v763 = vpack.c.b16 %v691, %v687
        %v764 = vpack.c.b16 %v692, %v688
        %v765 = vpack.c.b16 %v693, %v689
        %v766 = vpack.c.b16 %v694, %v690
        %v767 = vpack.c.b16 %v699, %v695
        %v768 = vpack.c.b16 %v700, %v696
        %v769 = vpack.c.b16 %v701, %v697
        %v770 = vpack.c.b16 %v702, %v698
        %v771 = vpack.c.b16 %v707, %v703
        %v772 = vpack.c.b16 %v708, %v704
        %v773 = vpack.c.b16 %v709, %v705
        %v774 = vpack.c.b16 %v710, %v706
        %839 = vmatprep.subr.bf16.mxu0 %v712
        %840 = vmatpush1.bf16.msra.mxu0 %v711
        %841 = vmatprep.subr.bf16.mxu0 %v716
        %842 = vmatpush1.bf16.msra.mxu0 %v715
        %843 = vmatprep.subr.bf16.mxu0 %v720
        %844 = vmatpush1.bf16.msra.mxu0 %v719
        %845 = vmatprep.subr.bf16.mxu0 %v724
        %846 = vmatpush1.bf16.msra.mxu0 %v723
        %847 = vmatprep.subr.bf16.mxu0 %v728
        %848 = vmatpush1.bf16.msra.mxu0 %v727
        %849 = vmatprep.subr.bf16.mxu0 %v732
        %850 = vmatpush1.bf16.msra.mxu0 %v731
        %851 = vmatprep.subr.bf16.mxu0 %v736
        %852 = vmatpush1.bf16.msra.mxu0 %v735
        %853 = vmatprep.subr.bf16.mxu0 %v740
        %854 = vmatpush1.bf16.msra.mxu0 %v739
        %855 = vmatprep.subr.bf16.mxu0 %v744
        %856 = vmatpush1.bf16.msra.mxu0 %v743
        %857 = vmatprep.subr.bf16.mxu0 %v748
        %858 = vmatpush1.bf16.msra.mxu0 %v747
        %859 = vmatprep.subr.bf16.mxu0 %v752
        %860 = vmatpush1.bf16.msra.mxu0 %v751
        %861 = vmatprep.subr.bf16.mxu0 %v756
        %862 = vmatpush1.bf16.msra.mxu0 %v755
        %863 = vmatprep.subr.bf16.mxu0 %v760
        %864 = vmatpush1.bf16.msra.mxu0 %v759
        %865 = vmatprep.subr.bf16.mxu0 %v764
        %866 = vmatpush1.bf16.msra.mxu0 %v763
        %867 = vmatprep.subr.bf16.mxu0 %v768
        %868 = vmatpush1.bf16.msra.mxu0 %v767
        %869 = vmatprep.subr.bf16.mxu0 %v772
        %870 = vmatpush1.bf16.msra.mxu0 %v771
        %871 = vmatprep.mubr.bf16.mxu0 %v504
        %872 = vmatmul.mubr.bf16.gmra.mrb[0].mxu0 %v503
        %v873 = vpop.f32.mrb[0].mxu0
        %v874 = vadd.f32 %v462, %v873
        %v875 = vpop.f32.mrb[0].mxu0
        %v876 = vadd.f32 %v466, %v875
        %v877 = vpop.f32.mrb[0].mxu0
        %v878 = vadd.f32 %v462, %v877
        %v879 = vpop.f32.mrb[0].mxu0
        %v880 = vadd.f32 %v466, %v879
        %881 = vmatprep.mubr.bf16.mxu0 %v506
        %882 = vmatmul.mubr.bf16.gmra.mrb[0].mxu0 %v505
        %v883 = vpop.f32.mrb[0].mxu0
        %v884 = vadd.f32 %v462, %v883
        %v885 = vpop.f32.mrb[0].mxu0
        %v886 = vadd.f32 %v466, %v885
        %v887 = vpop.f32.mrb[0].mxu0
        %v888 = vadd.f32 %v462, %v887
        %v889 = vpop.f32.mrb[0].mxu0
        %v890 = vadd.f32 %v466, %v889
        %891 = vmatprep.mubr.bf16.mxu0 %v508
        %892 = vmatmul.mubr.bf16.gmra.mrb[0].mxu0 %v507
        %v893 = vpop.f32.mrb[0].mxu0
        %v894 = vadd.f32 %v462, %v893
        %v895 = vpop.f32.mrb[0].mxu0
        %v896 = vadd.f32 %v466, %v895
        %v897 = vpop.f32.mrb[0].mxu0
        %v898 = vadd.f32 %v462, %v897
        %v899 = vpop.f32.mrb[0].mxu0
        %v900 = vadd.f32 %v466, %v899
        %901 = vmatprep.mubr.bf16.mxu0 %v510
        %902 = vmatmul.mubr.bf16.gmra.mrb[0].mxu0 %v509
        %v903 = vpop.f32.mrb[0].mxu0
        %v904 = vadd.f32 %v462, %v903
        %v905 = vpop.f32.mrb[0].mxu0
        %v906 = vadd.f32 %v466, %v905
        %v907 = vpop.f32.mrb[0].mxu0
        %v908 = vadd.f32 %v462, %v907
        %v909 = vpop.f32.mrb[0].mxu0
        %v910 = vadd.f32 %v466, %v909
        %911 = vdwg.mxu0
        %912 = vmatprep.subr.bf16.mxu0 %v714
        %913 = vmatpush1.bf16.msra.mxu0 %v713
        %914 = vmatprep.subr.bf16.mxu0 %v718
        %915 = vmatpush1.bf16.msra.mxu0 %v717
        %916 = vmatprep.subr.bf16.mxu0 %v722
        %917 = vmatpush1.bf16.msra.mxu0 %v721
        %918 = vmatprep.subr.bf16.mxu0 %v726
        %919 = vmatpush1.bf16.msra.mxu0 %v725
        %920 = vmatprep.subr.bf16.mxu0 %v730
        %921 = vmatpush1.bf16.msra.mxu0 %v729
        %922 = vmatprep.subr.bf16.mxu0 %v734
        %923 = vmatpush1.bf16.msra.mxu0 %v733
        %924 = vmatprep.subr.bf16.mxu0 %v738
        %925 = vmatpush1.bf16.msra.mxu0 %v737
        %926 = vmatprep.subr.bf16.mxu0 %v742
        %927 = vmatpush1.bf16.msra.mxu0 %v741
        %928 = vmatprep.subr.bf16.mxu0 %v746
        %929 = vmatpush1.bf16.msra.mxu0 %v745
        %930 = vmatprep.subr.bf16.mxu0 %v750
        %931 = vmatpush1.bf16.msra.mxu0 %v749
        %932 = vmatprep.subr.bf16.mxu0 %v754
        %933 = vmatpush1.bf16.msra.mxu0 %v753
        %934 = vmatprep.subr.bf16.mxu0 %v758
        %935 = vmatpush1.bf16.msra.mxu0 %v757
        %936 = vmatprep.subr.bf16.mxu0 %v762
        %937 = vmatpush1.bf16.msra.mxu0 %v761
        %938 = vmatprep.subr.bf16.mxu0 %v766
        %939 = vmatpush1.bf16.msra.mxu0 %v765
        %940 = vmatprep.subr.bf16.mxu0 %v770
        %941 = vmatpush1.bf16.msra.mxu0 %v769
        %942 = vmatprep.subr.bf16.mxu0 %v774
        %943 = vmatpush1.bf16.msra.mxu0 %v773
        %944 = vmatprep.mubr.bf16.mxu0 %v504
        %945 = vmatmul.mubr.bf16.gmra.mrb[0].mxu0 %v503
        %v946 = vpop.f32.mrb[0].mxu0
        %v947 = vadd.f32 %v470, %v946
        %v948 = vpop.f32.mrb[0].mxu0
        %v949 = vadd.f32 %v474, %v948
        %v950 = vpop.f32.mrb[0].mxu0
        %v951 = vadd.f32 %v470, %v950
        %v952 = vpop.f32.mrb[0].mxu0
        %v953 = vadd.f32 %v474, %v952
        %954 = vmatprep.mubr.bf16.mxu0 %v506
        %955 = vmatmul.mubr.bf16.gmra.mrb[0].mxu0 %v505
        %v956 = vpop.f32.mrb[0].mxu0
        %v957 = vadd.f32 %v470, %v956
        %v958 = vpop.f32.mrb[0].mxu0
        %v959 = vadd.f32 %v474, %v958
        %v960 = vpop.f32.mrb[0].mxu0
        %v961 = vadd.f32 %v470, %v960
        %v962 = vpop.f32.mrb[0].mxu0
        %v963 = vadd.f32 %v474, %v962
        %964 = vmatprep.mubr.bf16.mxu0 %v508
        %965 = vmatmul.mubr.bf16.gmra.mrb[0].mxu0 %v507
        %v966 = vpop.f32.mrb[0].mxu0
        %v967 = vadd.f32 %v470, %v966
        %v968 = vpop.f32.mrb[0].mxu0
        %v969 = vadd.f32 %v474, %v968
        %v970 = vpop.f32.mrb[0].mxu0
        %v971 = vadd.f32 %v470, %v970
        %v972 = vpop.f32.mrb[0].mxu0
        %v973 = vadd.f32 %v474, %v972
        %974 = vmatprep.mubr.bf16.mxu0 %v510
        %975 = vmatmul.mubr.bf16.gmra.mrb[0].mxu0 %v509
        %v976 = vpop.f32.mrb[0].mxu0
        %v977 = vadd.f32 %v470, %v976
        %v978 = vpop.f32.mrb[0].mxu0
        %v979 = vadd.f32 %v474, %v978
        %v980 = vpop.f32.mrb[0].mxu0
        %v981 = vadd.f32 %v470, %v980
        %v982 = vpop.f32.mrb[0].mxu0
        %v983 = vadd.f32 %v474, %v982
        %984 = vdwg.mxu0
        %v985 = vxor.u32 %v947, 2147483648
        %v986 = vxor.u32 %v949, 2147483648
        %v987 = vxor.u32 %v951, 2147483648
        %v988 = vxor.u32 %v953, 2147483648
        %v989 = vxor.u32 %v957, 2147483648
        %v990 = vxor.u32 %v959, 2147483648
        %v991 = vxor.u32 %v961, 2147483648
        %v992 = vxor.u32 %v963, 2147483648
        %v993 = vxor.u32 %v967, 2147483648
        %v994 = vxor.u32 %v969, 2147483648
        %v995 = vxor.u32 %v971, 2147483648
        %v996 = vxor.u32 %v973, 2147483648
        %v997 = vxor.u32 %v977, 2147483648
        %v998 = vxor.u32 %v979, 2147483648
        %v999 = vxor.u32 %v981, 2147483648
        %v1000 = vxor.u32 %v983, 2147483648
        %v1001 = vmul.f32 %v985, 1.442695
        %v1002 = vpow.pop %v1001
        %v1003 = vmul.f32 %v986, 1.442695
        %v1004 = vpow.pop %v1003
        %v1005 = vmul.f32 %v987, 1.442695
        %v1006 = vpow.pop %v1005
        %v1007 = vmul.f32 %v988, 1.442695
        %v1008 = vpow.pop %v1007
        %v1009 = vmul.f32 %v989, 1.442695
        %v1010 = vpow.pop %v1009
        %v1011 = vmul.f32 %v990, 1.442695
        %v1012 = vpow.pop %v1011
        %v1013 = vmul.f32 %v991, 1.442695
        %v1014 = vpow.pop %v1013
        %v1015 = vmul.f32 %v992, 1.442695
        %v1016 = vpow.pop %v1015
        %v1017 = vmul.f32 %v993, 1.442695
        %v1018 = vpow.pop %v1017
        %v1019 = vmul.f32 %v994, 1.442695
        %v1020 = vpow.pop %v1019
        %v1021 = vmul.f32 %v995, 1.442695
        %v1022 = vpow.pop %v1021
        %v1023 = vmul.f32 %v996, 1.442695
        %v1024 = vpow.pop %v1023
        %v1025 = vmul.f32 %v997, 1.442695
        %v1026 = vpow.pop %v1025
        %v1027 = vmul.f32 %v998, 1.442695
        %v1028 = vpow.pop %v1027
        %v1029 = vmul.f32 %v999, 1.442695
        %v1030 = vpow.pop %v1029
        %v1031 = vmul.f32 %v1000, 1.442695
        %v1032 = vpow.pop %v1031
        %v1033 = vadd.f32 %v1002, 1.0
        %v1034 = vadd.f32 %v1004, 1.0
        %v1035 = vadd.f32 %v1006, 1.0
        %v1036 = vadd.f32 %v1008, 1.0
        %v1037 = vadd.f32 %v1010, 1.0
        %v1038 = vadd.f32 %v1012, 1.0
        %v1039 = vadd.f32 %v1014, 1.0
        %v1040 = vadd.f32 %v1016, 1.0
        %v1041 = vadd.f32 %v1018, 1.0
        %v1042 = vadd.f32 %v1020, 1.0
        %v1043 = vadd.f32 %v1022, 1.0
        %v1044 = vadd.f32 %v1024, 1.0
        %v1045 = vadd.f32 %v1026, 1.0
        %v1046 = vadd.f32 %v1028, 1.0
        %v1047 = vadd.f32 %v1030, 1.0
        %v1048 = vadd.f32 %v1032, 1.0
        %v1049 = vrcp.pop %v1033
        %v1050 = vmul.f32 1.0, %v1049
        %v1051 = vrcp.pop %v1034
        %v1052 = vmul.f32 1.0, %v1051
        %v1053 = vrcp.pop %v1035
        %v1054 = vmul.f32 1.0, %v1053
        %v1055 = vrcp.pop %v1036
        %v1056 = vmul.f32 1.0, %v1055
        %v1057 = vrcp.pop %v1037
        %v1058 = vmul.f32 1.0, %v1057
        %v1059 = vrcp.pop %v1038
        %v1060 = vmul.f32 1.0, %v1059
        %v1061 = vrcp.pop %v1039
        %v1062 = vmul.f32 1.0, %v1061
        %v1063 = vrcp.pop %v1040
        %v1064 = vmul.f32 1.0, %v1063
        %v1065 = vrcp.pop %v1041
        %v1066 = vmul.f32 1.0, %v1065
        %v1067 = vrcp.pop %v1042
        %v1068 = vmul.f32 1.0, %v1067
        %v1069 = vrcp.pop %v1043
        %v1070 = vmul.f32 1.0, %v1069
        %v1071 = vrcp.pop %v1044
        %v1072 = vmul.f32 1.0, %v1071
        %v1073 = vrcp.pop %v1045
        %v1074 = vmul.f32 1.0, %v1073
        %v1075 = vrcp.pop %v1046
        %v1076 = vmul.f32 1.0, %v1075
        %v1077 = vrcp.pop %v1047
        %v1078 = vmul.f32 1.0, %v1077
        %v1079 = vrcp.pop %v1048
        %v1080 = vmul.f32 1.0, %v1079
        %v1081 = vmul.f32 %v947, %v1050
        %v1082 = vmul.f32 %v949, %v1052
        %v1083 = vmul.f32 %v951, %v1054
        %v1084 = vmul.f32 %v953, %v1056
        %v1085 = vmul.f32 %v957, %v1058
        %v1086 = vmul.f32 %v959, %v1060
        %v1087 = vmul.f32 %v961, %v1062
        %v1088 = vmul.f32 %v963, %v1064
        %v1089 = vmul.f32 %v967, %v1066
        %v1090 = vmul.f32 %v969, %v1068
        %v1091 = vmul.f32 %v971, %v1070
        %v1092 = vmul.f32 %v973, %v1072
        %v1093 = vmul.f32 %v977, %v1074
        %v1094 = vmul.f32 %v979, %v1076
        %v1095 = vmul.f32 %v981, %v1078
        %v1096 = vmul.f32 %v983, %v1080
        %v1097 = vmul.f32 %v874, %v1081
        %v1098 = vmul.f32 %v876, %v1082
        %v1099 = vmul.f32 %v878, %v1083
        %v1100 = vmul.f32 %v880, %v1084
        %v1101 = vmul.f32 %v884, %v1085
        %v1102 = vmul.f32 %v886, %v1086
        %v1103 = vmul.f32 %v888, %v1087
        %v1104 = vmul.f32 %v890, %v1088
        %v1105 = vmul.f32 %v894, %v1089
        %v1106 = vmul.f32 %v896, %v1090
        %v1107 = vmul.f32 %v898, %v1091
        %v1108 = vmul.f32 %v900, %v1092
        %v1109 = vmul.f32 %v904, %v1093
        %v1110 = vmul.f32 %v906, %v1094
        %v1111 = vmul.f32 %v908, %v1095
        %v1112 = vmul.f32 %v910, %v1096
        %v1113 = vld [vmem:[#allocation2] sm:$0xff]
        %v1114 = vld [vmem:[#allocation2 + $0x8] sm:$0xff]
        %v1115 = vld [vmem:[#allocation2 + $0x10] sm:$0xff]
        %v1116 = vld [vmem:[#allocation2 + $0x18] sm:$0xff]
        %v1117 = vld [vmem:[#allocation2 + $0x20] sm:$0xff]
        %v1118 = vld [vmem:[#allocation2 + $0x28] sm:$0xff]
        %v1119 = vld [vmem:[#allocation2 + $0x30] sm:$0xff]
        %v1120 = vld [vmem:[#allocation2 + $0x38] sm:$0xff]
        %v1121 = vld [vmem:[#allocation2 + $0x40] sm:$0xff]
        %v1122 = vld [vmem:[#allocation2 + $0x48] sm:$0xff]
        %v1123 = vld [vmem:[#allocation2 + $0x50] sm:$0xff]
        %v1124 = vld [vmem:[#allocation2 + $0x58] sm:$0xff]
        %v1125 = vld [vmem:[#allocation2 + $0x60] sm:$0xff]
        %v1126 = vld [vmem:[#allocation2 + $0x68] sm:$0xff]
        %v1127 = vld [vmem:[#allocation2 + $0x70] sm:$0xff]
        %v1128 = vld [vmem:[#allocation2 + $0x78] sm:$0xff]
        %v1129 = vpack.c.bf16 %v1099, %v1097
        %v1130 = vpack.c.bf16 %v1100, %v1098
        %v1131 = vpack.c.bf16 %v1103, %v1101
        %v1132 = vpack.c.bf16 %v1104, %v1102
        %v1133 = vpack.c.bf16 %v1107, %v1105
        %v1134 = vpack.c.bf16 %v1108, %v1106
        %v1135 = vpack.c.bf16 %v1111, %v1109
        %v1136 = vpack.c.bf16 %v1112, %v1110
        %v1137 = vld [vmem:[%s324] sm:$0xff]
        %v1138 = vld [vmem:[%s324 + $0x8] sm:$0xff]
        %v1139 = vld [vmem:[%s324 + $0x10] sm:$0xff]
        %v1140 = vld [vmem:[%s324 + $0x18] sm:$0xff]
        %v1141 = vld [vmem:[%s324 + $0x20] sm:$0xff]
        %v1142 = vld [vmem:[%s324 + $0x28] sm:$0xff]
        %v1143 = vld [vmem:[%s324 + $0x30] sm:$0xff]
        %v1144 = vld [vmem:[%s324 + $0x38] sm:$0xff]
        %v1145 = vld [vmem:[%s324 + $0x40] sm:$0xff]
        %v1146 = vld [vmem:[%s324 + $0x48] sm:$0xff]
        %v1147 = vld [vmem:[%s324 + $0x50] sm:$0xff]
        %v1148 = vld [vmem:[%s324 + $0x58] sm:$0xff]
        %v1149 = vld [vmem:[%s324 + $0x60] sm:$0xff]
        %v1150 = vld [vmem:[%s324 + $0x68] sm:$0xff]
        %v1151 = vld [vmem:[%s324 + $0x70] sm:$0xff]
        %v1152 = vld [vmem:[%s324 + $0x78] sm:$0xff]
        %v1153 = vld [vmem:[%s324 + $0x80] sm:$0xff]
        %v1154 = vld [vmem:[%s324 + $0x88] sm:$0xff]
        %v1155 = vld [vmem:[%s324 + $0x90] sm:$0xff]
        %v1156 = vld [vmem:[%s324 + $0x98] sm:$0xff]
        %v1157 = vld [vmem:[%s324 + $0xa0] sm:$0xff]
        %v1158 = vld [vmem:[%s324 + $0xa8] sm:$0xff]
        %v1159 = vld [vmem:[%s324 + $0xb0] sm:$0xff]
        %v1160 = vld [vmem:[%s324 + $0xb8] sm:$0xff]
        %v1161 = vld [vmem:[%s324 + $0xc0] sm:$0xff]
        %v1162 = vld [vmem:[%s324 + $0xc8] sm:$0xff]
        %v1163 = vld [vmem:[%s324 + $0xd0] sm:$0xff]
        %v1164 = vld [vmem:[%s324 + $0xd8] sm:$0xff]
        %v1165 = vld [vmem:[%s324 + $0xe0] sm:$0xff]
        %v1166 = vld [vmem:[%s324 + $0xe8] sm:$0xff]
        %v1167 = vld [vmem:[%s324 + $0xf0] sm:$0xff]
        %v1168 = vld [vmem:[%s324 + $0xf8] sm:$0xff]
        %v1201 = vunpack.c.l.b16 %v1137
        %v1202 = vunpack.c.h.b16 %v1137
        %v1203 = vunpack.c.l.b16 %v1138
        %v1204 = vunpack.c.h.b16 %v1138
        %v1205 = vunpack.c.l.b16 %v1139
        %v1206 = vunpack.c.h.b16 %v1139
        %v1207 = vunpack.c.l.b16 %v1140
        %v1208 = vunpack.c.h.b16 %v1140
        %v1209 = vunpack.c.l.b16 %v1141
        %v1210 = vunpack.c.h.b16 %v1141
        %v1211 = vunpack.c.l.b16 %v1142
        %v1212 = vunpack.c.h.b16 %v1142
        %v1213 = vunpack.c.l.b16 %v1143
        %v1214 = vunpack.c.h.b16 %v1143
        %v1215 = vunpack.c.l.b16 %v1144
        %v1216 = vunpack.c.h.b16 %v1144
        %v1217 = vunpack.c.l.b16 %v1145
        %v1218 = vunpack.c.h.b16 %v1145
        %v1219 = vunpack.c.l.b16 %v1146
        %v1220 = vunpack.c.h.b16 %v1146
        %v1221 = vunpack.c.l.b16 %v1147
        %v1222 = vunpack.c.h.b16 %v1147
        %v1223 = vunpack.c.l.b16 %v1148
        %v1224 = vunpack.c.h.b16 %v1148
        %v1225 = vunpack.c.l.b16 %v1149
        %v1226 = vunpack.c.h.b16 %v1149
        %v1227 = vunpack.c.l.b16 %v1150
        %v1228 = vunpack.c.h.b16 %v1150
        %v1229 = vunpack.c.l.b16 %v1151
        %v1230 = vunpack.c.h.b16 %v1151
        %v1231 = vunpack.c.l.b16 %v1152
        %v1232 = vunpack.c.h.b16 %v1152
        %v1233 = vunpack.c.l.b16 %v1153
        %v1234 = vunpack.c.h.b16 %v1153
        %v1235 = vunpack.c.l.b16 %v1154
        %v1236 = vunpack.c.h.b16 %v1154
        %v1237 = vunpack.c.l.b16 %v1155
        %v1238 = vunpack.c.h.b16 %v1155
        %v1239 = vunpack.c.l.b16 %v1156
        %v1240 = vunpack.c.h.b16 %v1156
        %v1241 = vunpack.c.l.b16 %v1157
        %v1242 = vunpack.c.h.b16 %v1157
        %v1243 = vunpack.c.l.b16 %v1158
        %v1244 = vunpack.c.h.b16 %v1158
        %v1245 = vunpack.c.l.b16 %v1159
        %v1246 = vunpack.c.h.b16 %v1159
        %v1247 = vunpack.c.l.b16 %v1160
        %v1248 = vunpack.c.h.b16 %v1160
        %v1249 = vunpack.c.l.b16 %v1161
        %v1250 = vunpack.c.h.b16 %v1161
        %v1251 = vunpack.c.l.b16 %v1162
        %v1252 = vunpack.c.h.b16 %v1162
        %v1253 = vunpack.c.l.b16 %v1163
        %v1254 = vunpack.c.h.b16 %v1163
        %v1255 = vunpack.c.l.b16 %v1164
        %v1256 = vunpack.c.h.b16 %v1164
        %v1257 = vunpack.c.l.b16 %v1165
        %v1258 = vunpack.c.h.b16 %v1165
        %v1259 = vunpack.c.l.b16 %v1166
        %v1260 = vunpack.c.h.b16 %v1166
        %v1261 = vunpack.c.l.b16 %v1167
        %v1262 = vunpack.c.h.b16 %v1167
        %v1263 = vunpack.c.l.b16 %v1168
        %v1264 = vunpack.c.h.b16 %v1168
        %v1265 = vpack.c.b16 %v1203, %v1201
        %v1266 = vpack.c.b16 %v1204, %v1202
        %v1267 = vpack.c.b16 %v1207, %v1205
        %v1268 = vpack.c.b16 %v1208, %v1206
        %v1269 = vpack.c.b16 %v1211, %v1209
        %v1270 = vpack.c.b16 %v1212, %v1210
        %v1271 = vpack.c.b16 %v1215, %v1213
        %v1272 = vpack.c.b16 %v1216, %v1214
        %v1273 = vpack.c.b16 %v1219, %v1217
        %v1274 = vpack.c.b16 %v1220, %v1218
        %v1275 = vpack.c.b16 %v1223, %v1221
        %v1276 = vpack.c.b16 %v1224, %v1222
        %v1277 = vpack.c.b16 %v1227, %v1225
        %v1278 = vpack.c.b16 %v1228, %v1226
        %v1279 = vpack.c.b16 %v1231, %v1229
        %v1280 = vpack.c.b16 %v1232, %v1230
        %v1281 = vpack.c.b16 %v1235, %v1233
        %v1282 = vpack.c.b16 %v1236, %v1234
        %v1283 = vpack.c.b16 %v1239, %v1237
        %v1284 = vpack.c.b16 %v1240, %v1238
        %v1285 = vpack.c.b16 %v1243, %v1241
        %v1286 = vpack.c.b16 %v1244, %v1242
        %v1287 = vpack.c.b16 %v1247, %v1245
        %v1288 = vpack.c.b16 %v1248, %v1246
        %v1289 = vpack.c.b16 %v1251, %v1249
        %v1290 = vpack.c.b16 %v1252, %v1250
        %v1291 = vpack.c.b16 %v1255, %v1253
        %v1292 = vpack.c.b16 %v1256, %v1254
        %v1293 = vpack.c.b16 %v1259, %v1257
        %v1294 = vpack.c.b16 %v1260, %v1258
        %v1295 = vpack.c.b16 %v1263, %v1261
        %v1296 = vpack.c.b16 %v1264, %v1262
        %1329 = vmatprep.subr.bf16.mxu0 %v1266
        %1330 = vmatpush1.bf16.msra.mxu0 %v1265
        %1331 = vmatprep.subr.bf16.mxu0 %v1268
        %1332 = vmatpush1.bf16.msra.mxu0 %v1267
        %1333 = vmatprep.subr.bf16.mxu0 %v1270
        %1334 = vmatpush1.bf16.msra.mxu0 %v1269
        %1335 = vmatprep.subr.bf16.mxu0 %v1272
        %1336 = vmatpush1.bf16.msra.mxu0 %v1271
        %1337 = vmatprep.subr.bf16.mxu0 %v1274
        %1338 = vmatpush1.bf16.msra.mxu0 %v1273
        %1339 = vmatprep.subr.bf16.mxu0 %v1276
        %1340 = vmatpush1.bf16.msra.mxu0 %v1275
        %1341 = vmatprep.subr.bf16.mxu0 %v1278
        %1342 = vmatpush1.bf16.msra.mxu0 %v1277
        %1343 = vmatprep.subr.bf16.mxu0 %v1280
        %1344 = vmatpush1.bf16.msra.mxu0 %v1279
        %1345 = vmatprep.subr.bf16.mxu0 %v1282
        %1346 = vmatpush1.bf16.msra.mxu0 %v1281
        %1347 = vmatprep.subr.bf16.mxu0 %v1284
        %1348 = vmatpush1.bf16.msra.mxu0 %v1283
        %1349 = vmatprep.subr.bf16.mxu0 %v1286
        %1350 = vmatpush1.bf16.msra.mxu0 %v1285
        %1351 = vmatprep.subr.bf16.mxu0 %v1288
        %1352 = vmatpush1.bf16.msra.mxu0 %v1287
        %1353 = vmatprep.subr.bf16.mxu0 %v1290
        %1354 = vmatpush1.bf16.msra.mxu0 %v1289
        %1355 = vmatprep.subr.bf16.mxu0 %v1292
        %1356 = vmatpush1.bf16.msra.mxu0 %v1291
        %1357 = vmatprep.subr.bf16.mxu0 %v1294
        %1358 = vmatpush1.bf16.msra.mxu0 %v1293
        %1359 = vmatprep.subr.bf16.mxu0 %v1296
        %1360 = vmatpush1.bf16.msra.mxu0 %v1295
        %1361 = vmatprep.mubr.bf16.mxu0 %v1130
        %1362 = vmatmul.mubr.bf16.gmra.mrb[0].mxu0 %v1129
        %v1363 = vpop.f32.mrb[0].mxu0
        %v1364 = vadd.f32 0.0, %v1363
        %v1365 = vpop.f32.mrb[0].mxu0
        %v1366 = vadd.f32 0.0, %v1365
        %v1367 = vpop.f32.mrb[0].mxu0
        %v1368 = vadd.f32 0.0, %v1367
        %v1369 = vpop.f32.mrb[0].mxu0
        %v1370 = vadd.f32 0.0, %v1369
        %1371 = vmatprep.mubr.bf16.mxu0 %v1132
        %1372 = vmatmul.mubr.bf16.gmra.mrb[0].mxu0 %v1131
        %v1373 = vpop.f32.mrb[0].mxu0
        %v1374 = vadd.f32 0.0, %v1373
        %v1375 = vpop.f32.mrb[0].mxu0
        %v1376 = vadd.f32 0.0, %v1375
        %v1377 = vpop.f32.mrb[0].mxu0
        %v1378 = vadd.f32 0.0, %v1377
        %v1379 = vpop.f32.mrb[0].mxu0
        %v1380 = vadd.f32 0.0, %v1379
        %1381 = vmatprep.mubr.bf16.mxu0 %v1134
        %1382 = vmatmul.mubr.bf16.gmra.mrb[0].mxu0 %v1133
        %v1383 = vpop.f32.mrb[0].mxu0
        %v1384 = vadd.f32 0.0, %v1383
        %v1385 = vpop.f32.mrb[0].mxu0
        %v1386 = vadd.f32 0.0, %v1385
        %v1387 = vpop.f32.mrb[0].mxu0
        %v1388 = vadd.f32 0.0, %v1387
        %v1389 = vpop.f32.mrb[0].mxu0
        %v1390 = vadd.f32 0.0, %v1389
        %1391 = vmatprep.mubr.bf16.mxu0 %v1136
        %1392 = vmatmul.mubr.bf16.gmra.mrb[0].mxu0 %v1135
        %v1393 = vpop.f32.mrb[0].mxu0
        %v1394 = vadd.f32 0.0, %v1393
        %v1395 = vpop.f32.mrb[0].mxu0
        %v1396 = vadd.f32 0.0, %v1395
        %v1397 = vpop.f32.mrb[0].mxu0
        %v1398 = vadd.f32 0.0, %v1397
        %v1399 = vpop.f32.mrb[0].mxu0
        %v1400 = vadd.f32 0.0, %v1399
        %1401 = vdwg.mxu0
        %v1402 = vadd.f32 %v1113, %v1364
        %v1403 = vadd.f32 %v1114, %v1366
        %v1404 = vadd.f32 %v1115, %v1368
        %v1405 = vadd.f32 %v1116, %v1370
        %v1406 = vadd.f32 %v1117, %v1374
        %v1407 = vadd.f32 %v1118, %v1376
        %v1408 = vadd.f32 %v1119, %v1378
        %v1409 = vadd.f32 %v1120, %v1380
        %v1410 = vadd.f32 %v1121, %v1384
        %v1411 = vadd.f32 %v1122, %v1386
        %v1412 = vadd.f32 %v1123, %v1388
        %v1413 = vadd.f32 %v1124, %v1390
        %v1414 = vadd.f32 %v1125, %v1394
        %v1415 = vadd.f32 %v1126, %v1396
        %v1416 = vadd.f32 %v1127, %v1398
        %v1417 = vadd.f32 %v1128, %v1400
        %1418 = vst [vmem:[#allocation2] sm:$0xff] %v1402
        %1419 = vst [vmem:[#allocation2 + $0x8] sm:$0xff] %v1403
        %1420 = vst [vmem:[#allocation2 + $0x10] sm:$0xff] %v1404
        %1421 = vst [vmem:[#allocation2 + $0x18] sm:$0xff] %v1405
        %1422 = vst [vmem:[#allocation2 + $0x20] sm:$0xff] %v1406
        %1423 = vst [vmem:[#allocation2 + $0x28] sm:$0xff] %v1407
        %1424 = vst [vmem:[#allocation2 + $0x30] sm:$0xff] %v1408
        %1425 = vst [vmem:[#allocation2 + $0x38] sm:$0xff] %v1409
        %1426 = vst [vmem:[#allocation2 + $0x40] sm:$0xff] %v1410
        %1427 = vst [vmem:[#allocation2 + $0x48] sm:$0xff] %v1411
        %1428 = vst [vmem:[#allocation2 + $0x50] sm:$0xff] %v1412
        %1429 = vst [vmem:[#allocation2 + $0x58] sm:$0xff] %v1413
        %1430 = vst [vmem:[#allocation2 + $0x60] sm:$0xff] %v1414
        %1431 = vst [vmem:[#allocation2 + $0x68] sm:$0xff] %v1415
        %1432 = vst [vmem:[#allocation2 + $0x70] sm:$0xff] %v1416
        %1433 = vst [vmem:[#allocation2 + $0x78] sm:$0xff] %v1417
        %p1434 = scmp.eq.s32.totalorder %s29, 1
        // Predicated region
        $region65: #{jais_mlp.1} parent=39 // pred_check
          %p1435 = pneg %p1434
        $region66: #{jais_mlp.1} parent=39 // pred_check_branch
          %1437 = sbr.rel (%p1435) target = $region68
        $region67: #{jais_mlp.1} parent=39 // pred_region
          %v1438 = vld [vmem:[#allocation2] sm:$0xff]
          %v1439 = vld [vmem:[#allocation2 + $0x8] sm:$0xff]
          %v1440 = vld [vmem:[#allocation2 + $0x10] sm:$0xff]
          %v1441 = vld [vmem:[#allocation2 + $0x18] sm:$0xff]
          %v1442 = vld [vmem:[#allocation2 + $0x20] sm:$0xff]
          %v1443 = vld [vmem:[#allocation2 + $0x28] sm:$0xff]
          %v1444 = vld [vmem:[#allocation2 + $0x30] sm:$0xff]
          %v1445 = vld [vmem:[#allocation2 + $0x38] sm:$0xff]
          %v1446 = vld [vmem:[#allocation2 + $0x40] sm:$0xff]
          %v1447 = vld [vmem:[#allocation2 + $0x48] sm:$0xff]
          %v1448 = vld [vmem:[#allocation2 + $0x50] sm:$0xff]
          %v1449 = vld [vmem:[#allocation2 + $0x58] sm:$0xff]
          %v1450 = vld [vmem:[#allocation2 + $0x60] sm:$0xff]
          %v1451 = vld [vmem:[#allocation2 + $0x68] sm:$0xff]
          %v1452 = vld [vmem:[#allocation2 + $0x70] sm:$0xff]
          %v1453 = vld [vmem:[#allocation2 + $0x78] sm:$0xff]
          %v1454 = vld [vmem:[#allocation11] sm:$0x3]
          %v1456 = vlaneseq
          %v1457 = vshrl.u32 %v1456, 7
          %v1458 = vsub.s32 0, %v1457
          %v1459 = vrot.slane %v1454, %v1458
          %v1460 = vlaneseq
          %v1461 = vshrl.u32 %v1460, 7
          %v1462 = vsub.s32 1, %v1461
          %v1463 = vrot.slane %v1454, %v1462
          %v1466 = vadd.f32 %v1438, %v1459
          %v1467 = vadd.f32 %v1439, %v1463
          %v1468 = vadd.f32 %v1440, %v1459
          %v1469 = vadd.f32 %v1441, %v1463
          %v1470 = vadd.f32 %v1442, %v1459
          %v1471 = vadd.f32 %v1443, %v1463
          %v1472 = vadd.f32 %v1444, %v1459
          %v1473 = vadd.f32 %v1445, %v1463
          %v1474 = vadd.f32 %v1446, %v1459
          %v1475 = vadd.f32 %v1447, %v1463
          %v1476 = vadd.f32 %v1448, %v1459
          %v1477 = vadd.f32 %v1449, %v1463
          %v1478 = vadd.f32 %v1450, %v1459
          %v1479 = vadd.f32 %v1451, %v1463
          %v1480 = vadd.f32 %v1452, %v1459
          %v1481 = vadd.f32 %v1453, %v1463
          %1482 = vst [vmem:[#allocation12] sm:$0xff] %v1466
          %1483 = vst [vmem:[#allocation12 + $0x8] sm:$0xff] %v1467
          %1484 = vst [vmem:[#allocation12 + $0x10] sm:$0xff] %v1468
          %1485 = vst [vmem:[#allocation12 + $0x18] sm:$0xff] %v1469
          %1486 = vst [vmem:[#allocation12 + $0x20] sm:$0xff] %v1470
          %1487 = vst [vmem:[#allocation12 + $0x28] sm:$0xff] %v1471
          %1488 = vst [vmem:[#allocation12 + $0x30] sm:$0xff] %v1472
          %1489 = vst [vmem:[#allocation12 + $0x38] sm:$0xff] %v1473
          %1490 = vst [vmem:[#allocation12 + $0x40] sm:$0xff] %v1474
          %1491 = vst [vmem:[#allocation12 + $0x48] sm:$0xff] %v1475
          %1492 = vst [vmem:[#allocation12 + $0x50] sm:$0xff] %v1476
          %1493 = vst [vmem:[#allocation12 + $0x58] sm:$0xff] %v1477
          %1494 = vst [vmem:[#allocation12 + $0x60] sm:$0xff] %v1478
          %1495 = vst [vmem:[#allocation12 + $0x68] sm:$0xff] %v1479
          %1496 = vst [vmem:[#allocation12 + $0x70] sm:$0xff] %v1480
          %1497 = vst [vmem:[#allocation12 + $0x78] sm:$0xff] %v1481
        $region68: #{jais_mlp.1} parent=39 // pred_fallthru
          _
        // Predicated region
        $region69: #{jais_mlp.1} parent=39 // pred_check
          %p1498 = pneg %p179
        $region70: #{jais_mlp.1} parent=39 // pred_check_branch
          %1500 = sbr.rel (%p1498) target = $region72
        $region71: #{jais_mlp.1} parent=39 // pred_region
          %s1501 = smul.u32 8, %s28
          %s1503 = ssub.s32 2048, 2048
          %1504 = vsyncadd [#allocation5], %s1503
          %s1505 = smul.addr %s1501, 2
          %s1506 = smul.addr %s1505, 128
          %s1507 = scalar_lea.hbm %s5, %s1506
          %s1508 = sshll.u32 [#allocation12], 4
          %s1509 = int_to_ptr.vmem [resolvable:$true] %s1508
          %1514 = dma.vmem_to_hbm [thread:$0]  %s1509, 2048, %s1507, [#allocation5], 256, 256, 16
        $region72: #{jais_mlp.1} parent=39 // pred_fallthru
          _
        // Predicated region
        $region73: #{jais_mlp.1} parent=39 // pred_check
          %p1515 = pneg %p179
        $region74: #{jais_mlp.1} parent=39 // pred_check_branch
          %1517 = sbr.rel (%p1515) target = $region76
        $region75: #{jais_mlp.1} parent=39 // pred_region
          %1518 = dma.done [#allocation5], 2048
        $region76: #{jais_mlp.1} parent=39 // pred_fallthru
          _
      $region40: #{jais_mlp.1} parent=5 // pred_fallthru
        _
      %p1519 = scmp.le.s32.totalorder 2, %s19
      // Predicated region
      $region77: #{jais_mlp.1} parent=5 // pred_check
        %p1520 = pneg %p1519
      $region78: #{jais_mlp.1} parent=5 // pred_check_branch
        %1522 = sbr.rel (%p1520) target = $region80
      $region79: #{jais_mlp.1} parent=5 // pred_region
        %s1523 = ssub.s32 %s19, 2
      $region80: #{jais_mlp.1} parent=5 // pred_fallthru
        _
    $region6: #{jais_mlp.1} parent=1 // loop_footer
      %s23 = sadd.s32 1, %s19
    $region7: #{jais_mlp.1} parent=1 // loop_footer_branch
      %18 = sbr.rel target = $region3
    $region8: #{jais_mlp.1} parent=1 // loop_exit
      _
    %1524 = vsyncpa [#allocation4], 1
    %s1525 = scalar_lea.sflag [#allocation4], 1
    %1526 = vsyncpa %s1525, 1
    %1527 = vsyncpa [#allocation7], 1
    %s1528 = scalar_lea.sflag [#allocation7], 1
    %1529 = vsyncpa %s1528, 1
    %1530 = vsyncpa [#allocation10], 1
    %s1531 = scalar_lea.sflag [#allocation10], 1
    %1532 = vsyncpa %s1531, 1
    %1533 = vsyncpa [#allocation5], 1
    %s1534 = scalar_lea.sflag [#allocation5], 1
    %1535 = vsyncpa %s1534, 1

</llo_original>
